<compile_context>
chip_gen: v7x
topology: tpu7x:2x2x1
jax: 0.10.0
libtpu: 0.0.40
codegen_flags: <defaults>
</compile_context>

<pallas_src>
import functools

import jax
import jax.numpy as jnp
from jax import lax
from jax.experimental import pallas as pl
from jax.experimental.pallas import tpu as pltpu


# -----------------------------------------------------------------------------
# Fused kernel: pointwise (both branches) + depthwise + biases, per (n, h-tile).
# -----------------------------------------------------------------------------
def _fused_kernel(x_ref, w_ref, b_ref, dw_ref, db_ref, o_ref, ypad_ref,
                  *, W, Cin, Cout, k, pad, TH):
    # x_ref   : (H, W, Cin)            whole image (resident across h-tiles)
    # w_ref   : (Cin, 2*Cout)          [point_wise | point_wise_bias] weights
    # b_ref   : (1, 2*Cout)            [pw bias | pwb bias]
    # dw_ref  : (k*k, Cout)            depthwise weights (tap-major)
    # db_ref  : (1, Cout)              depthwise bias
    # o_ref   : (TH, W, Cout)          output tile
    # ypad_ref: (TH+2p, W+2p, Cout)    zero-padded pointwise output (VMEM scratch)
    t = pl.program_id(1)
    T = pl.num_programs(1)
    r0 = pl.multiple_of(t * TH, TH)

    w_cat = w_ref[...]
    b_cat = b_ref[...]

    def pointwise(rows_flat):
        # (R, Cin) @ (Cin, 2*Cout) + bias -> (R, 2*Cout), one fused MXU matmul.
        return jnp.dot(rows_flat, w_cat, preferred_element_type=jnp.float32) + b_cat

    # Zero scratch once per step: gives the "same"-conv zero padding on all sides
    # (left/right cols always; top/bottom rows at the image boundary tiles).
    ypad_ref[...] = jnp.zeros_like(ypad_ref)

    # --- main tile: both 1x1 branches in one matmul ---------------------------
    x_tile = x_ref[pl.ds(r0, TH), :, :]                       # (TH, W, Cin)
    yz = pointwise(x_tile.reshape(TH * W, Cin))               # (TH*W, 2*Cout)
    y = yz[:, :Cout].reshape(TH, W, Cout)                     # point_wise branch
    z = yz[:, Cout:].reshape(TH, W, Cout)                     # point_wise_bias branch
    ypad_ref[pad:pad + TH, pad:pad + W, :] = y

    # --- halo rows (only the point_wise branch is needed by the depthwise) ----
    if pad > 0:
        @pl.when(t > 0)
        def _top_halo():
            xh = x_ref[pl.ds(r0 - pad, pad), :, :].reshape(pad * W, Cin)
            yh = pointwise(xh)[:, :Cout].reshape(pad, W, Cout)
            ypad_ref[0:pad, pad:pad + W, :] = yh

        @pl.when(t < T - 1)
        def _bottom_halo():
            xh = x_ref[pl.ds(r0 + TH, pad), :, :].reshape(pad * W, Cin)
            yh = pointwise(xh)[:, :Cout].reshape(pad, W, Cout)
            ypad_ref[pad + TH:pad + TH + pad, pad:pad + W, :] = yh

    # --- depthwise conv taps; acc starts from (z + dw_bias) -------------------
    dw_taps = dw_ref[...]                                     # (k*k, Cout)
    acc = z + db_ref[...].reshape(1, 1, Cout)
    for dy in range(k):
        for dx in range(k):
            tap = dw_taps[dy * k + dx].reshape(1, 1, Cout)
            acc = acc + ypad_ref[dy:dy + TH, dx:dx + W, :] * tap
    o_ref[...] = acc.astype(o_ref.dtype)


def _pick_tile_h(H, pad, target):
    """Largest divisor of H that is <= target (and >= pad so halos stay in-bounds)."""
    th = 1
    for d in range(1, H + 1):
        if H % d == 0 and d <= max(target, 1):
            th = d
    if th < max(pad, 1):
        th = H
    return th


# -----------------------------------------------------------------------------
# Module wrapper (NCHW in / NCHW out, matching the PyTorch module).
# -----------------------------------------------------------------------------
def bsconv_u_bias_forward(x_nchw, params, kernel_size, tile_h=8):
    N, Cin, H, W = x_nchw.shape
    Cout = params["pw_w"].shape[0]
    k = kernel_size
    pad = (k - 1) // 2

    # NCHW -> NHWC (glue).
    x_nhwc = jnp.transpose(x_nchw, (0, 2, 3, 1)).astype(jnp.float32)

    # Parameter repacking (tiny, weight-sized glue).
    w1 = params["pw_w"].reshape(Cout, Cin).T                       # (Cin, Cout)
    w2 = params["pwb_w"].reshape(Cout, Cin).T                      # (Cin, Cout)
    w_cat = jnp.concatenate([w1, w2], axis=1).astype(jnp.float32)  # (Cin, 2*Cout)
    b_cat = jnp.concatenate(
        [params["pw_b"], params["pwb_b"]]).reshape(1, 2 * Cout).astype(jnp.float32)
    dw = params["dw_w"].reshape(Cout, k * k).T.astype(jnp.float32)  # (k*k, Cout)
    db = params["dw_b"].reshape(1, Cout).astype(jnp.float32)

    TH = _pick_tile_h(H, pad, tile_h)
    T = H // TH

    kernel = functools.partial(
        _fused_kernel, W=W, Cin=Cin, Cout=Cout, k=k, pad=pad, TH=TH)

    out_nhwc = pl.pallas_call(
        kernel,
        out_shape=jax.ShapeDtypeStruct((N, H, W, Cout), jnp.float32),
        grid=(N, T),
        in_specs=[
            # Full image per batch element; block index only depends on n, so it
            # is DMA'd once per image and stays VMEM-resident across h-tiles.
            pl.BlockSpec((None, H, W, Cin), lambda n, t: (n, 0, 0, 0)),
            pl.BlockSpec((Cin, 2 * Cout), lambda n, t: (0, 0)),
            pl.BlockSpec((1, 2 * Cout), lambda n, t: (0, 0)),
            pl.BlockSpec((k * k, Cout), lambda n, t: (0, 0)),
            pl.BlockSpec((1, Cout), lambda n, t: (0, 0)),
        ],
        out_specs=pl.BlockSpec((None, TH, W, Cout), lambda n, t: (n, t, 0, 0)),
        scratch_shapes=[
            pltpu.VMEM((TH + 2 * pad, W + 2 * pad, Cout), jnp.float32),
        ],
        compiler_params=pltpu.CompilerParams(
            dimension_semantics=("parallel", "parallel"),
            vmem_limit_bytes=64 * 1024 * 1024,
        ),
    )(x_nhwc, w_cat, b_cat, dw, db)

    # NHWC -> NCHW (glue).
    return jnp.transpose(out_nhwc, (0, 3, 1, 2))


# -----------------------------------------------------------------------------
# Pure-JAX reference (lax convs, NCHW) for correctness check.
# -----------------------------------------------------------------------------
def reference_forward(x, params, kernel_size):
    k = kernel_size
    pad = (k - 1) // 2
    Cout = params["pw_w"].shape[0]
    pw = lax.conv_general_dilated(x, params["pw_w"], (1, 1), "VALID")
    pw = pw + params["pw_b"][None, :, None, None]
    dw = lax.conv_general_dilated(
        pw, params["dw_w"], (1, 1), [(pad, pad), (pad, pad)],
        feature_group_count=Cout,
    )
    dw = dw + params["dw_b"][None, :, None, None]
    bias = lax.conv_general_dilated(x, params["pwb_w"], (1, 1), "VALID")
    bias = bias + params["pwb_b"][None, :, None, None]
    return dw + bias


if __name__ == "__main__":
    N, Cin, Cout, H, W, k = 2, 4, 8, 16, 16, 3

    key = jax.random.PRNGKey(0)
    keys = jax.random.split(key, 7)
    params = {
        "pw_w": 0.1 * jax.random.normal(keys[0], (Cout, Cin, 1, 1), jnp.float32),
        "pw_b": 0.1 * jax.random.normal(keys[1], (Cout,), jnp.float32),
        "pwb_w": 0.1 * jax.random.normal(keys[2], (Cout, Cin, 1, 1), jnp.float32),
        "pwb_b": 0.1 * jax.random.normal(keys[3], (Cout,), jnp.float32),
        "dw_w": 0.1 * jax.random.normal(keys[4], (Cout, 1, k, k), jnp.float32),
        "dw_b": 0.1 * jax.random.normal(keys[5], (Cout,), jnp.float32),
    }
    x = jax.random.normal(keys[6], (N, Cin, H, W), jnp.float32)

    out = bsconv_u_bias_forward(x, params, k)
    out = jax.block_until_ready(out)

    ref = reference_forward(x, params, k)
    assert out.shape == ref.shape == (N, Cout, H, W)
    assert jnp.allclose(out, ref, atol=1e-4, rtol=1e-4), "mismatch vs reference"

    print("KERNEL_OK")
</pallas_src>

<mosaic_0001>
module attributes {stable_mosaic.version = 11 : i64} {
  func.func @_fused_kernel(%arg0: i32, %arg1: i32, %arg2: memref<1x16x16x4xf32, #tpu.memory_space<vmem>>, %arg3: memref<4x16xf32, #tpu.memory_space<vmem>>, %arg4: memref<1x16xf32, #tpu.memory_space<vmem>>, %arg5: memref<9x8xf32, #tpu.memory_space<vmem>>, %arg6: memref<1x8xf32, #tpu.memory_space<vmem>>, %arg7: memref<1x8x16x8xf32, #tpu.memory_space<vmem>>, %arg8: memref<10x18x8xf32, #tpu.memory_space<vmem>>) attributes {dimension_semantics = [#tpu.dimension_semantics<parallel>, #tpu.dimension_semantics<parallel>], iteration_bounds = array<i64: 2, 2>, scalar_prefetch = 0 : i64, scratch_operands = 1 : i64, tpu.core_type = #tpu.core_type<tc>, window_params = [{transform_indices = @transform_0, window_bounds = array<i64: 1, 16, 16, 4>}, {pipeline_mode = #tpu.pipeline_mode<synchronous>, transform_indices = @transform_1, window_bounds = array<i64: 4, 16>}, {pipeline_mode = #tpu.pipeline_mode<synchronous>, transform_indices = @transform_2, window_bounds = array<i64: 1, 16>}, {pipeline_mode = #tpu.pipeline_mode<synchronous>, transform_indices = @transform_3, window_bounds = array<i64: 9, 8>}, {pipeline_mode = #tpu.pipeline_mode<synchronous>, transform_indices = @transform_4, window_bounds = array<i64: 1, 8>}, {transform_indices = @transform_5, window_bounds = array<i64: 1, 8, 16, 8>}]} {
    %c8_i32 = arith.constant 8 : i32
    %0 = arith.muli %arg1, %c8_i32 : i32
    %1 = tpu.assume_multiple %0, 8 : i32
    %c0 = arith.constant 0 : index
    %c0_0 = arith.constant 0 : index
    %2 = vector.load %arg3[%c0, %c0_0] : memref<4x16xf32, #tpu.memory_space<vmem>>, vector<4x16xf32>
    %c0_1 = arith.constant 0 : index
    %c0_2 = arith.constant 0 : index
    %3 = vector.load %arg4[%c0_1, %c0_2] : memref<1x16xf32, #tpu.memory_space<vmem>>, vector<1x16xf32>
    %cst = arith.constant 0.000000e+00 : f32
    %4 = vector.broadcast %cst : f32 to vector<10x18x8xf32>
    %c0_3 = arith.constant 0 : index
    %c0_4 = arith.constant 0 : index
    %c0_5 = arith.constant 0 : index
    %5 = vector.load %arg8[%c0_3, %c0_4, %c0_5] : memref<10x18x8xf32, #tpu.memory_space<vmem>>, vector<10x18x8xf32>
    tpu.vector_store %arg8[%c0_3, %c0_4, %c0_5], %4 {strides = array<i32>} : memref<10x18x8xf32, #tpu.memory_space<vmem>>, vector<10x18x8xf32>,
    %c0_6 = arith.constant 0 : index
    %6 = arith.index_cast %1 : i32 to index
    %c0_7 = arith.constant 0 : index
    %c0_8 = arith.constant 0 : index
    %7 = vector.load %arg2[%c0_6, %6, %c0_7, %c0_8] : memref<1x16x16x4xf32, #tpu.memory_space<vmem>>, vector<1x8x16x4xf32>
    %8 = vector.shape_cast %7 : vector<1x8x16x4xf32> to vector<8x16x4xf32>
    %9 = vector.shape_cast %8 : vector<8x16x4xf32> to vector<128x4xf32>
    %cst_9 = arith.constant dense<0.000000e+00> : vector<128x16xf32>
    %10 = tpu.matmul %9, %2, %cst_9 {dimension_numbers = #tpu.dot_dimension_numbers<[1], [0], [0], [1], [0, 0, 1, 1], [], []>} : vector<128x4xf32>, vector<4x16xf32>, vector<128x16xf32> -> vector<128x16xf32>
    %11 = vector.broadcast %3 : vector<1x16xf32> to vector<128x16xf32>
    %12 = arith.addf %10, %11 : vector<128x16xf32>
    %13 = vector.extract_strided_slice %12 {offsets = [0, 0], sizes = [128, 8], strides = [1, 1]} : vector<128x16xf32> to vector<128x8xf32>
    %14 = vector.shape_cast %13 : vector<128x8xf32> to vector<8x16x8xf32>
    %15 = vector.extract_strided_slice %12 {offsets = [0, 8], sizes = [128, 8], strides = [1, 1]} : vector<128x16xf32> to vector<128x8xf32>
    %16 = vector.shape_cast %15 : vector<128x8xf32> to vector<8x16x8xf32>
    %c1 = arith.constant 1 : index
    %c1_10 = arith.constant 1 : index
    %c0_11 = arith.constant 0 : index
    %17 = vector.load %arg8[%c1, %c1_10, %c0_11] : memref<10x18x8xf32, #tpu.memory_space<vmem>>, vector<8x16x8xf32>
    tpu.vector_store %arg8[%c1, %c1_10, %c0_11], %14 {strides = array<i32>} : memref<10x18x8xf32, #tpu.memory_space<vmem>>, vector<8x16x8xf32>,
    %c0_i32 = arith.constant 0 : i32
    %18 = arith.cmpi sgt, %arg1, %c0_i32 : i32
    %19 = arith.extui %18 : i1 to i32
    %c0_i32_12 = arith.constant 0 : i32
    %20 = arith.cmpi ne, %19, %c0_i32_12 : i32
    scf.if %20 {
      %c1_i32_48 = arith.constant 1 : i32
      %95 = arith.subi %1, %c1_i32_48 : i32
      %c0_49 = arith.constant 0 : index
      %96 = arith.index_cast %95 : i32 to index
      %c0_50 = arith.constant 0 : index
      %c0_51 = arith.constant 0 : index
      %97 = vector.load %arg2[%c0_49, %96, %c0_50, %c0_51] : memref<1x16x16x4xf32, #tpu.memory_space<vmem>>, vector<1x1x16x4xf32>
      %98 = vector.shape_cast %97 : vector<1x1x16x4xf32> to vector<1x16x4xf32>
      %99 = vector.shape_cast %98 : vector<1x16x4xf32> to vector<16x4xf32>
      %cst_52 = arith.constant dense<0.000000e+00> : vector<16x16xf32>
      %100 = tpu.matmul %99, %2, %cst_52 {dimension_numbers = #tpu.dot_dimension_numbers<[1], [0], [0], [1], [0, 0, 1, 1], [], []>} : vector<16x4xf32>, vector<4x16xf32>, vector<16x16xf32> -> vector<16x16xf32>
      %101 = vector.broadcast %3 : vector<1x16xf32> to vector<16x16xf32>
      %102 = arith.addf %100, %101 : vector<16x16xf32>
      %103 = vector.extract_strided_slice %102 {offsets = [0, 0], sizes = [16, 8], strides = [1, 1]} : vector<16x16xf32> to vector<16x8xf32>
      %104 = vector.shape_cast %103 : vector<16x8xf32> to vector<1x16x8xf32>
      %c0_53 = arith.constant 0 : index
      %c1_54 = arith.constant 1 : index
      %c0_55 = arith.constant 0 : index
      %105 = vector.load %arg8[%c0_53, %c1_54, %c0_55] : memref<10x18x8xf32, #tpu.memory_space<vmem>>, vector<1x16x8xf32>
      tpu.vector_store %arg8[%c0_53, %c1_54, %c0_55], %104 {strides = array<i32>} : memref<10x18x8xf32, #tpu.memory_space<vmem>>, vector<1x16x8xf32>,
    } else {
    }
    %c1_i32 = arith.constant 1 : i32
    %21 = arith.cmpi slt, %arg1, %c1_i32 : i32
    %22 = arith.extui %21 : i1 to i32
    %c0_i32_13 = arith.constant 0 : i32
    %23 = arith.cmpi ne, %22, %c0_i32_13 : i32
    scf.if %23 {
      %c8_i32_48 = arith.constant 8 : i32
      %95 = arith.addi %1, %c8_i32_48 : i32
      %c0_49 = arith.constant 0 : index
      %96 = arith.index_cast %95 : i32 to index
      %c0_50 = arith.constant 0 : index
      %c0_51 = arith.constant 0 : index
      %97 = vector.load %arg2[%c0_49, %96, %c0_50, %c0_51] : memref<1x16x16x4xf32, #tpu.memory_space<vmem>>, vector<1x1x16x4xf32>
      %98 = vector.shape_cast %97 : vector<1x1x16x4xf32> to vector<1x16x4xf32>
      %99 = vector.shape_cast %98 : vector<1x16x4xf32> to vector<16x4xf32>
      %cst_52 = arith.constant dense<0.000000e+00> : vector<16x16xf32>
      %100 = tpu.matmul %99, %2, %cst_52 {dimension_numbers = #tpu.dot_dimension_numbers<[1], [0], [0], [1], [0, 0, 1, 1], [], []>} : vector<16x4xf32>, vector<4x16xf32>, vector<16x16xf32> -> vector<16x16xf32>
      %101 = vector.broadcast %3 : vector<1x16xf32> to vector<16x16xf32>
      %102 = arith.addf %100, %101 : vector<16x16xf32>
      %103 = vector.extract_strided_slice %102 {offsets = [0, 0], sizes = [16, 8], strides = [1, 1]} : vector<16x16xf32> to vector<16x8xf32>
      %104 = vector.shape_cast %103 : vector<16x8xf32> to vector<1x16x8xf32>
      %c9 = arith.constant 9 : index
      %c1_53 = arith.constant 1 : index
      %c0_54 = arith.constant 0 : index
      %105 = vector.load %arg8[%c9, %c1_53, %c0_54] : memref<10x18x8xf32, #tpu.memory_space<vmem>>, vector<1x16x8xf32>
      tpu.vector_store %arg8[%c9, %c1_53, %c0_54], %104 {strides = array<i32>} : memref<10x18x8xf32, #tpu.memory_space<vmem>>, vector<1x16x8xf32>,
    } else {
    }
    %c0_14 = arith.constant 0 : index
    %c0_15 = arith.constant 0 : index
    %24 = vector.load %arg5[%c0_14, %c0_15] : memref<9x8xf32, #tpu.memory_space<vmem>>, vector<9x8xf32>
    %c0_16 = arith.constant 0 : index
    %c0_17 = arith.constant 0 : index
    %25 = vector.load %arg6[%c0_16, %c0_17] : memref<1x8xf32, #tpu.memory_space<vmem>>, vector<1x8xf32>
    %26 = vector.shape_cast %25 : vector<1x8xf32> to vector<1x1x8xf32>
    %27 = vector.broadcast %26 : vector<1x1x8xf32> to vector<8x16x8xf32>
    %28 = arith.addf %16, %27 : vector<8x16x8xf32>
    %29 = vector.extract_strided_slice %24 {offsets = [0, 0], sizes = [1, 8], strides = [1, 1]} : vector<9x8xf32> to vector<1x8xf32>
    %30 = vector.shape_cast %29 : vector<1x8xf32> to vector<8xf32>
    %31 = vector.shape_cast %30 : vector<8xf32> to vector<1x1x8xf32>
    %c0_18 = arith.constant 0 : index
    %c0_19 = arith.constant 0 : index
    %c0_20 = arith.constant 0 : index
    %32 = vector.load %arg8[%c0_18, %c0_19, %c0_20] : memref<10x18x8xf32, #tpu.memory_space<vmem>>, vector<8x16x8xf32>
    %33 = vector.broadcast %31 : vector<1x1x8xf32> to vector<8x16x8xf32>
    %34 = arith.mulf %32, %33 : vector<8x16x8xf32>
    %35 = arith.addf %28, %34 : vector<8x16x8xf32>
    %36 = vector.extract_strided_slice %24 {offsets = [1, 0], sizes = [1, 8], strides = [1, 1]} : vector<9x8xf32> to vector<1x8xf32>
    %37 = vector.shape_cast %36 : vector<1x8xf32> to vector<8xf32>
    %38 = vector.shape_cast %37 : vector<8xf32> to vector<1x1x8xf32>
    %c0_21 = arith.constant 0 : index
    %c1_22 = arith.constant 1 : index
    %c0_23 = arith.constant 0 : index
    %39 = vector.load %arg8[%c0_21, %c1_22, %c0_23] : memref<10x18x8xf32, #tpu.memory_space<vmem>>, vector<8x16x8xf32>
    %40 = vector.broadcast %38 : vector<1x1x8xf32> to vector<8x16x8xf32>
    %41 = arith.mulf %39, %40 : vector<8x16x8xf32>
    %42 = arith.addf %35, %41 : vector<8x16x8xf32>
    %43 = vector.extract_strided_slice %24 {offsets = [2, 0], sizes = [1, 8], strides = [1, 1]} : vector<9x8xf32> to vector<1x8xf32>
    %44 = vector.shape_cast %43 : vector<1x8xf32> to vector<8xf32>
    %45 = vector.shape_cast %44 : vector<8xf32> to vector<1x1x8xf32>
    %c0_24 = arith.constant 0 : index
    %c2 = arith.constant 2 : index
    %c0_25 = arith.constant 0 : index
    %46 = vector.load %arg8[%c0_24, %c2, %c0_25] : memref<10x18x8xf32, #tpu.memory_space<vmem>>, vector<8x16x8xf32>
    %47 = vector.broadcast %45 : vector<1x1x8xf32> to vector<8x16x8xf32>
    %48 = arith.mulf %46, %47 : vector<8x16x8xf32>
    %49 = arith.addf %42, %48 : vector<8x16x8xf32>
    %50 = vector.extract_strided_slice %24 {offsets = [3, 0], sizes = [1, 8], strides = [1, 1]} : vector<9x8xf32> to vector<1x8xf32>
    %51 = vector.shape_cast %50 : vector<1x8xf32> to vector<8xf32>
    %52 = vector.shape_cast %51 : vector<8xf32> to vector<1x1x8xf32>
    %c1_26 = arith.constant 1 : index
    %c0_27 = arith.constant 0 : index
    %c0_28 = arith.constant 0 : index
    %53 = vector.load %arg8[%c1_26, %c0_27, %c0_28] : memref<10x18x8xf32, #tpu.memory_space<vmem>>, vector<8x16x8xf32>
    %54 = vector.broadcast %52 : vector<1x1x8xf32> to vector<8x16x8xf32>
    %55 = arith.mulf %53, %54 : vector<8x16x8xf32>
    %56 = arith.addf %49, %55 : vector<8x16x8xf32>
    %57 = vector.extract_strided_slice %24 {offsets = [4, 0], sizes = [1, 8], strides = [1, 1]} : vector<9x8xf32> to vector<1x8xf32>
    %58 = vector.shape_cast %57 : vector<1x8xf32> to vector<8xf32>
    %59 = vector.shape_cast %58 : vector<8xf32> to vector<1x1x8xf32>
    %c1_29 = arith.constant 1 : index
    %c1_30 = arith.constant 1 : index
    %c0_31 = arith.constant 0 : index
    %60 = vector.load %arg8[%c1_29, %c1_30, %c0_31] : memref<10x18x8xf32, #tpu.memory_space<vmem>>, vector<8x16x8xf32>
    %61 = vector.broadcast %59 : vector<1x1x8xf32> to vector<8x16x8xf32>
    %62 = arith.mulf %60, %61 : vector<8x16x8xf32>
    %63 = arith.addf %56, %62 : vector<8x16x8xf32>
    %64 = vector.extract_strided_slice %24 {offsets = [5, 0], sizes = [1, 8], strides = [1, 1]} : vector<9x8xf32> to vector<1x8xf32>
    %65 = vector.shape_cast %64 : vector<1x8xf32> to vector<8xf32>
    %66 = vector.shape_cast %65 : vector<8xf32> to vector<1x1x8xf32>
    %c1_32 = arith.constant 1 : index
    %c2_33 = arith.constant 2 : index
    %c0_34 = arith.constant 0 : index
    %67 = vector.load %arg8[%c1_32, %c2_33, %c0_34] : memref<10x18x8xf32, #tpu.memory_space<vmem>>, vector<8x16x8xf32>
    %68 = vector.broadcast %66 : vector<1x1x8xf32> to vector<8x16x8xf32>
    %69 = arith.mulf %67, %68 : vector<8x16x8xf32>
    %70 = arith.addf %63, %69 : vector<8x16x8xf32>
    %71 = vector.extract_strided_slice %24 {offsets = [6, 0], sizes = [1, 8], strides = [1, 1]} : vector<9x8xf32> to vector<1x8xf32>
    %72 = vector.shape_cast %71 : vector<1x8xf32> to vector<8xf32>
    %73 = vector.shape_cast %72 : vector<8xf32> to vector<1x1x8xf32>
    %c2_35 = arith.constant 2 : index
    %c0_36 = arith.constant 0 : index
    %c0_37 = arith.constant 0 : index
    %74 = vector.load %arg8[%c2_35, %c0_36, %c0_37] : memref<10x18x8xf32, #tpu.memory_space<vmem>>, vector<8x16x8xf32>
    %75 = vector.broadcast %73 : vector<1x1x8xf32> to vector<8x16x8xf32>
    %76 = arith.mulf %74, %75 : vector<8x16x8xf32>
    %77 = arith.addf %70, %76 : vector<8x16x8xf32>
    %78 = vector.extract_strided_slice %24 {offsets = [7, 0], sizes = [1, 8], strides = [1, 1]} : vector<9x8xf32> to vector<1x8xf32>
    %79 = vector.shape_cast %78 : vector<1x8xf32> to vector<8xf32>
    %80 = vector.shape_cast %79 : vector<8xf32> to vector<1x1x8xf32>
    %c2_38 = arith.constant 2 : index
    %c1_39 = arith.constant 1 : index
    %c0_40 = arith.constant 0 : index
    %81 = vector.load %arg8[%c2_38, %c1_39, %c0_40] : memref<10x18x8xf32, #tpu.memory_space<vmem>>, vector<8x16x8xf32>
    %82 = vector.broadcast %80 : vector<1x1x8xf32> to vector<8x16x8xf32>
    %83 = arith.mulf %81, %82 : vector<8x16x8xf32>
    %84 = arith.addf %77, %83 : vector<8x16x8xf32>
    %85 = vector.extract_strided_slice %24 {offsets = [8, 0], sizes = [1, 8], strides = [1, 1]} : vector<9x8xf32> to vector<1x8xf32>
    %86 = vector.shape_cast %85 : vector<1x8xf32> to vector<8xf32>
    %87 = vector.shape_cast %86 : vector<8xf32> to vector<1x1x8xf32>
    %c2_41 = arith.constant 2 : index
    %c2_42 = arith.constant 2 : index
    %c0_43 = arith.constant 0 : index
    %88 = vector.load %arg8[%c2_41, %c2_42, %c0_43] : memref<10x18x8xf32, #tpu.memory_space<vmem>>, vector<8x16x8xf32>
    %89 = vector.broadcast %87 : vector<1x1x8xf32> to vector<8x16x8xf32>
    %90 = arith.mulf %88, %89 : vector<8x16x8xf32>
    %91 = arith.addf %84, %90 : vector<8x16x8xf32>
    %c0_44 = arith.constant 0 : index
    %c0_45 = arith.constant 0 : index
    %c0_46 = arith.constant 0 : index
    %c0_47 = arith.constant 0 : index
    %92 = vector.load %arg7[%c0_44, %c0_45, %c0_46, %c0_47] : memref<1x8x16x8xf32, #tpu.memory_space<vmem>>, vector<1x8x16x8xf32>
    %93 = vector.shape_cast %92 : vector<1x8x16x8xf32> to vector<8x16x8xf32>
    %94 = vector.shape_cast %91 : vector<8x16x8xf32> to vector<1x8x16x8xf32>
    tpu.vector_store %arg7[%c0_44, %c0_45, %c0_46, %c0_47], %94 {strides = array<i32>} : memref<1x8x16x8xf32, #tpu.memory_space<vmem>>, vector<1x8x16x8xf32>,
    return
  }
  func.func @transform_0(%arg0: i32, %arg1: i32) -> (i32, i32, i32, i32) {
    %c0_i32 = arith.constant 0 : i32
    %c0_i32_0 = arith.constant 0 : i32
    %c0_i32_1 = arith.constant 0 : i32
    %c0_i32_2 = arith.constant 0 : i32
    return %arg0, %c0_i32, %c0_i32_0, %c0_i32_1 : i32, i32, i32, i32
  }
  func.func @transform_1(%arg0: i32, %arg1: i32) -> (i32, i32) {
    %c0_i32 = arith.constant 0 : i32
    %c0_i32_0 = arith.constant 0 : i32
    %c0_i32_1 = arith.constant 0 : i32
    return %c0_i32, %c0_i32_0 : i32, i32
  }
  func.func @transform_2(%arg0: i32, %arg1: i32) -> (i32, i32) {
    %c0_i32 = arith.constant 0 : i32
    %c0_i32_0 = arith.constant 0 : i32
    %c0_i32_1 = arith.constant 0 : i32
    return %c0_i32, %c0_i32_0 : i32, i32
  }
  func.func @transform_3(%arg0: i32, %arg1: i32) -> (i32, i32) {
    %c0_i32 = arith.constant 0 : i32
    %c0_i32_0 = arith.constant 0 : i32
    %c0_i32_1 = arith.constant 0 : i32
    return %c0_i32, %c0_i32_0 : i32, i32
  }
  func.func @transform_4(%arg0: i32, %arg1: i32) -> (i32, i32) {
    %c0_i32 = arith.constant 0 : i32
    %c0_i32_0 = arith.constant 0 : i32
    %c0_i32_1 = arith.constant 0 : i32
    return %c0_i32, %c0_i32_0 : i32, i32
  }
  func.func @transform_5(%arg0: i32, %arg1: i32) -> (i32, i32, i32, i32) {
    %c0_i32 = arith.constant 0 : i32
    %c0_i32_0 = arith.constant 0 : i32
    %c0_i32_1 = arith.constant 0 : i32
    return %arg0, %arg1, %c0_i32, %c0_i32_0 : i32, i32, i32, i32
  }
}

</mosaic_0001>

<llo_original>
// kernel: tpu_custom_call.1
$region0: #{tpu_custom_call.1}
  #allocation0 [shape = 'u32[]', space=smem, size = 0x4, offset = 0x4, fixed_abs, tag = 'smem constant byte address 0x4 - core index']
  #allocation1 [shape = 'u32[144,128]{1,0:T(1,128)}', space=vmem, size = 0x12000, scoped, tag = 'internal scratch']
  #allocation2 [shape = 'f32[10,18,8]{2,1,0:T(8,128)}', space=vmem, size = 0x1e000, scoped, tag = 'scratch operand']
  %s0 = inlined_call_operand.hbm [shape: f32[2,16,16,4], index: 0, kind: input, shape index: {}]
  %s1 = inlined_call_operand.hbm [shape: f32[4,16], index: 1, kind: input, shape index: {}]
  %s2 = inlined_call_operand.hbm [shape: f32[1,16], index: 2, kind: input, shape index: {}]
  %s3 = inlined_call_operand.hbm [shape: f32[9,8], index: 3, kind: input, shape index: {}]
  %s4 = inlined_call_operand.hbm [shape: f32[1,8], index: 4, kind: input, shape index: {}]
  %s5 = inlined_call_operand.hbm [shape: f32[2,16,16,8], index: 5, kind: output, shape index: {}]
  %s6 = sld [smem:[#allocation0]]
  $region81: #{tpu_custom_call.1} parent=0
    _
  %s8 = ssub.s32 1, %s6
  %s9 = scalar_select 0, %s8, %s6
  $region1: #{tpu_custom_call.1} parent=0
    #allocation3 [shape = 'u8[262144]{0}', space=vmem, size = 0x40000, scoped, tag = 'input window, operand 0']
    #allocation4 [shape = 's32[2]{0}', space=sflag, size = 0x8, scoped, tag = 'scoped memory for tpu_custom_call.1']
    #allocation5 [shape = 's32[2]{0}', space=sflag, size = 0x8, scoped, tag = 'scoped memory for tpu_custom_call.1']
    #allocation6 [shape = 'u8[2048]{0}', space=vmem, size = 0x800, scoped, tag = 'input window, operand 1, single buffered']
    #allocation7 [shape = 's32[1]{0}', space=sflag, size = 0x4, scoped, tag = 'scoped memory for tpu_custom_call.1']
    #allocation8 [shape = 'u8[512]{0}', space=vmem, size = 0x400, scoped, tag = 'input window, operand 2, single buffered']
    #allocation9 [shape = 'u8[8192]{0}', space=vmem, size = 0x2000, scoped, tag = 'input window, operand 3, single buffered']
    #allocation10 [shape = 's32[1]{0}', space=sflag, size = 0x4, scoped, tag = 'scoped memory for tpu_custom_call.1']
    #allocation11 [shape = 'u8[512]{0}', space=vmem, size = 0x400, scoped, tag = 'input window, operand 4, single buffered']
    #allocation12 [shape = 'u8[131072]{0}', space=vmem, size = 0x20000, scoped, tag = 'output window, operand 0']
    %10 = vsyncpa [#allocation4], 0
    %s11 = scalar_lea.sflag [#allocation4], 1
    %12 = vsyncpa %s11, 0
    %13 = vsyncpa [#allocation7], 0
    %14 = vsyncpa [#allocation10], 0
    %15 = vsyncpa [#allocation5], 0
    %s16 = scalar_lea.sflag [#allocation5], 1
    %17 = vsyncpa %s16, 0
    loop: start=0, step=1, limit=6
    $region2: #{tpu_custom_call.1} parent=1 // loop_pre_header
      _
    $region3: #{tpu_custom_call.1} parent=1 // loop_header
      %s19 = sphi 0, %s23
      %p20 = scmp.ge.s32.totalorder %s19, 6
      %s26 = sphi 0, %s38
      %s27 = sphi 0, %s34
      %s28 = sphi 0, %s26
      %s29 = sphi 0, %s27
      %s30 = sphi 0, %s28
      %s31 = sphi 0, %s29
      %s41 = sphi 0, %s43
      %s44 = sphi 0, %s41
      %s45 = sphi 0, %s44
      %s61 = sphi 0, %s45
      %s65 = sphi 0, %s65
      %s67 = sphi 0, %s65
      %s68 = sphi 0, %s67
      %s82 = sphi 0, %s68
      %s86 = sphi 0, %s86
      %s88 = sphi 0, %s86
      %s89 = sphi 0, %s88
      %s103 = sphi 0, %s89
      %s107 = sphi 0, %s107
      %s109 = sphi 0, %s107
      %s110 = sphi 0, %s109
      %s124 = sphi 0, %s110
      %s128 = sphi 0, %s128
      %s130 = sphi 0, %s128
      %s131 = sphi 0, %s130
      %s145 = sphi 0, %s131
      %s153 = sphi 0, %s155
      %s156 = sphi 0, %s153
      %s157 = sphi 0, %s156
      %s173 = sphi 0, %s157
    $region4: #{tpu_custom_call.1} parent=1 // loop_header_branch
      %22 = sbr.rel (%p20) target = $region8
    $region5: #{tpu_custom_call.1} parent=1 // loop_body
      %s24 = ssub.s32 %s19, 1
      %s25 = ssub.s32 %s19, 2
      %s32 = sadd.s32 1, %s27
      %p33 = scmp.ge.s32.totalorder %s32, 2
      %s34 = scalar_select %p33, 0, %s32
      %s35 = sadd.s32 1, %s26
      %s36 = scalar_select %p33, %s35, %s26
      %p37 = scmp.ge.s32.totalorder %s36, 2
      %s38 = scalar_select %p37, 0, %s36
      %s39 = ssub.s32 %s26, %s38
      %p40 = scmp.eq.s32.totalorder %s39, 0
      %s42 = sadd.s32 %s41, 1
      %s43 = scalar_select %p40, %s41, %s42
      %p46 = pneg %p40
      %p47 = scmp.eq.s32.totalorder %s19, 3
      %p48 = por %p46, %p47
      %p49 = scmp.ne.s32.totalorder %s41, %s44
      %p50 = scmp.eq.s32.totalorder %s19, 0
      %p51 = por %p49, %p50
      %p52 = scmp.ne.s32.totalorder %s41, %s44
      %p53 = scmp.eq.s32.totalorder %s24, 3
      %p54 = por %p52, %p53
      %p55 = scmp.ne.s32.totalorder %s44, %s45
      %p56 = scmp.eq.s32.totalorder %s24, 0
      %p57 = por %p55, %p56
      %p58 = scmp.ne.s32.totalorder %s44, %s45
      %p59 = scmp.eq.s32.totalorder %s25, 3
      %p60 = por %p58, %p59
      %p62 = scmp.ne.s32.totalorder %s45, %s61
      %p63 = scmp.eq.s32.totalorder %s25, 0
      %p64 = por %p62, %p63
      %s66 = sadd.s32 %s65, 1
      %p69 = scmp.eq.s32.totalorder %s19, 3
      %p70 = scmp.ne.s32.totalorder %s65, %s67
      %p71 = scmp.eq.s32.totalorder %s19, 0
      %p72 = por %p70, %p71
      %p73 = scmp.ne.s32.totalorder %s65, %s67
      %p74 = scmp.eq.s32.totalorder %s24, 3
      %p75 = por %p73, %p74
      %p76 = scmp.ne.s32.totalorder %s67, %s68
      %p77 = scmp.eq.s32.totalorder %s24, 0
      %p78 = por %p76, %p77
      %p79 = scmp.ne.s32.totalorder %s67, %s68
      %p80 = scmp.eq.s32.totalorder %s25, 3
      %p81 = por %p79, %p80
      %p83 = scmp.ne.s32.totalorder %s68, %s82
      %p84 = scmp.eq.s32.totalorder %s25, 0
      %p85 = por %p83, %p84
      %s87 = sadd.s32 %s86, 1
      %p90 = scmp.eq.s32.totalorder %s19, 3
      %p91 = scmp.ne.s32.totalorder %s86, %s88
      %p92 = scmp.eq.s32.totalorder %s19, 0
      %p93 = por %p91, %p92
      %p94 = scmp.ne.s32.totalorder %s86, %s88
      %p95 = scmp.eq.s32.totalorder %s24, 3
      %p96 = por %p94, %p95
      %p97 = scmp.ne.s32.totalorder %s88, %s89
      %p98 = scmp.eq.s32.totalorder %s24, 0
      %p99 = por %p97, %p98
      %p100 = scmp.ne.s32.totalorder %s88, %s89
      %p101 = scmp.eq.s32.totalorder %s25, 3
      %p102 = por %p100, %p101
      %p104 = scmp.ne.s32.totalorder %s89, %s103
      %p105 = scmp.eq.s32.totalorder %s25, 0
      %p106 = por %p104, %p105
      %s108 = sadd.s32 %s107, 1
      %p111 = scmp.eq.s32.totalorder %s19, 3
      %p112 = scmp.ne.s32.totalorder %s107, %s109
      %p113 = scmp.eq.s32.totalorder %s19, 0
      %p114 = por %p112, %p113
      %p115 = scmp.ne.s32.totalorder %s107, %s109
      %p116 = scmp.eq.s32.totalorder %s24, 3
      %p117 = por %p115, %p116
      %p118 = scmp.ne.s32.totalorder %s109, %s110
      %p119 = scmp.eq.s32.totalorder %s24, 0
      %p120 = por %p118, %p119
      %p121 = scmp.ne.s32.totalorder %s109, %s110
      %p122 = scmp.eq.s32.totalorder %s25, 3
      %p123 = por %p121, %p122
      %p125 = scmp.ne.s32.totalorder %s110, %s124
      %p126 = scmp.eq.s32.totalorder %s25, 0
      %p127 = por %p125, %p126
      %s129 = sadd.s32 %s128, 1
      %p132 = scmp.eq.s32.totalorder %s19, 3
      %p133 = scmp.ne.s32.totalorder %s128, %s130
      %p134 = scmp.eq.s32.totalorder %s19, 0
      %p135 = por %p133, %p134
      %p136 = scmp.ne.s32.totalorder %s128, %s130
      %p137 = scmp.eq.s32.totalorder %s24, 3
      %p138 = por %p136, %p137
      %p139 = scmp.ne.s32.totalorder %s130, %s131
      %p140 = scmp.eq.s32.totalorder %s24, 0
      %p141 = por %p139, %p140
      %p142 = scmp.ne.s32.totalorder %s130, %s131
      %p143 = scmp.eq.s32.totalorder %s25, 3
      %p144 = por %p142, %p143
      %p146 = scmp.ne.s32.totalorder %s131, %s145
      %p147 = scmp.eq.s32.totalorder %s25, 0
      %p148 = por %p146, %p147
      %s149 = ssub.s32 %s26, %s38
      %s150 = ssub.s32 %s27, %s34
      %s151 = sor.u32 %s149, %s150
      %p152 = scmp.eq.s32.totalorder %s151, 0
      %s154 = sadd.s32 %s153, 1
      %s155 = scalar_select %p152, %s153, %s154
      %p158 = pneg %p152
      %p159 = scmp.eq.s32.totalorder %s19, 3
      %p160 = por %p158, %p159
      %p161 = scmp.ne.s32.totalorder %s153, %s156
      %p162 = scmp.eq.s32.totalorder %s19, 0
      %p163 = por %p161, %p162
      %p164 = scmp.ne.s32.totalorder %s153, %s156
      %p165 = scmp.eq.s32.totalorder %s24, 3
      %p166 = por %p164, %p165
      %p167 = scmp.ne.s32.totalorder %s156, %s157
      %p168 = scmp.eq.s32.totalorder %s24, 0
      %p169 = por %p167, %p168
      %p170 = scmp.ne.s32.totalorder %s156, %s157
      %p171 = scmp.eq.s32.totalorder %s25, 3
      %p172 = por %p170, %p171
      %p174 = scmp.ne.s32.totalorder %s157, %s173
      %p175 = scmp.eq.s32.totalorder %s25, 0
      %p176 = por %p174, %p175
      %p177 = scmp.le.s32.totalorder 1, %s19
      %p178 = scmp.lt.s32.totalorder %s19, 5
      %p179 = pnand %p177, %p178
      %p180 = pneg %p179
      // Predicated region
      $region9: #{tpu_custom_call.1} parent=5 // pred_check
        _
      $region10: #{tpu_custom_call.1} parent=5 // pred_check_branch
        %182 = sbr.rel (%p179) target = $region12
      $region11: #{tpu_custom_call.1} parent=5 // pred_region
        %s183 = ssub.s32 %s19, 1
        // Predicated region
        $region13: #{tpu_custom_call.1} parent=11 // pred_check
          %p184 = pneg %p78
        $region14: #{tpu_custom_call.1} parent=11 // pred_check_branch
          %186 = sbr.rel (%p184) target = $region16
        $region15: #{tpu_custom_call.1} parent=11 // pred_region
          %s188 = ssub.s32 64, 64
          %189 = vsyncadd [#allocation7], %s188
          %s191 = sshll.u32 [#allocation6], 4
          %s192 = int_to_ptr.vmem [resolvable:$true] %s191
          %194 = dma.hbm_to_vmem [thread:$0]  %s1, 64, %s192, [#allocation7]
        $region16: #{tpu_custom_call.1} parent=11 // pred_fallthru
          _
        // Predicated region
        $region17: #{tpu_custom_call.1} parent=11 // pred_check
          %p195 = pneg %p99
        $region18: #{tpu_custom_call.1} parent=11 // pred_check_branch
          %197 = sbr.rel (%p195) target = $region20
        $region19: #{tpu_custom_call.1} parent=11 // pred_region
          %s199 = ssub.s32 16, 16
          %200 = vsyncadd [#allocation7], %s199
          %s202 = sshll.u32 [#allocation8], 4
          %s203 = int_to_ptr.vmem [resolvable:$true] %s202
          %205 = dma.hbm_to_vmem [thread:$0]  %s2, 16, %s203, [#allocation7]
        $region20: #{tpu_custom_call.1} parent=11 // pred_fallthru
          _
        // Predicated region
        $region21: #{tpu_custom_call.1} parent=11 // pred_check
          %p206 = pneg %p120
        $region22: #{tpu_custom_call.1} parent=11 // pred_check_branch
          %208 = sbr.rel (%p206) target = $region24
        $region23: #{tpu_custom_call.1} parent=11 // pred_region
          %s210 = ssub.s32 256, 256
          %211 = vsyncadd [#allocation10], %s210
          %s212 = sshll.u32 [#allocation9], 4
          %s213 = int_to_ptr.vmem [resolvable:$true] %s212
          %218 = dma.hbm_to_vmem [thread:$0]  %s3, 256, %s213, [#allocation10], 128, 128, 8
        $region24: #{tpu_custom_call.1} parent=11 // pred_fallthru
          _
        // Predicated region
        $region25: #{tpu_custom_call.1} parent=11 // pred_check
          %p219 = pneg %p141
        $region26: #{tpu_custom_call.1} parent=11 // pred_check_branch
          %221 = sbr.rel (%p219) target = $region28
        $region27: #{tpu_custom_call.1} parent=11 // pred_region
          %s223 = ssub.s32 16, 16
          %224 = vsyncadd [#allocation10], %s223
          %s226 = sshll.u32 [#allocation11], 4
          %s227 = int_to_ptr.vmem [resolvable:$true] %s226
          %229 = dma.hbm_to_vmem [thread:$0]  %s4, 16, %s227, [#allocation10]
        $region28: #{tpu_custom_call.1} parent=11 // pred_fallthru
          _
      $region12: #{tpu_custom_call.1} parent=5 // pred_fallthru
        _
      %p230 = scmp.lt.s32.totalorder %s19, 4
      // Predicated region
      $region29: #{tpu_custom_call.1} parent=5 // pred_check
        %p231 = pneg %p230
      $region30: #{tpu_custom_call.1} parent=5 // pred_check_branch
        %233 = sbr.rel (%p231) target = $region32
      $region31: #{tpu_custom_call.1} parent=5 // pred_region
        // Predicated region
        $region33: #{tpu_custom_call.1} parent=31 // pred_check
          %p234 = pneg %p51
        $region34: #{tpu_custom_call.1} parent=31 // pred_check_branch
          %236 = sbr.rel (%p234) target = $region36
        $region35: #{tpu_custom_call.1} parent=31 // pred_region
          %s237 = sand.u32 %s41, 1
          %s238 = scalar_lea.sflag [#allocation4], %s237
          %s239 = sand.u32 %s41, 1
          %s240 = smul.addr %s239, 256
          %s241 = scalar_lea.vmem [#allocation3], %s240
          %s243 = ssub.s32 4096, 4096
          %244 = vsyncadd %s238, %s243
          %s245 = smul.addr %s26, 32
          %s246 = smul.addr %s245, 128
          %s247 = scalar_lea.hbm %s0, %s246
          %s248 = sshll.u32 %s241, 4
          %s249 = int_to_ptr.vmem [resolvable:$true] %s248
          %254 = dma.hbm_to_vmem [thread:$0]  %s247, 4096, %s249, %s238, 128, 128, 8
        $region36: #{tpu_custom_call.1} parent=31 // pred_fallthru
          _
      $region32: #{tpu_custom_call.1} parent=5 // pred_fallthru
        _
      %p255 = scmp.le.s32.totalorder 1, %s19
      %p256 = scmp.lt.s32.totalorder %s19, 5
      %p257 = pnand %p255, %p256
      %p258 = pneg %p257
      // Predicated region
      $region37: #{tpu_custom_call.1} parent=5 // pred_check
        _
      $region38: #{tpu_custom_call.1} parent=5 // pred_check_branch
        %260 = sbr.rel (%p257) target = $region40
      $region39: #{tpu_custom_call.1} parent=5 // pred_region
        %s261 = ssub.s32 %s19, 1
        %s262 = sand.u32 %s44, 1
        %s263 = scalar_lea.sflag [#allocation4], %s262
        %s264 = sand.u32 %s44, 1
        %s265 = smul.addr %s264, 256
        %s266 = scalar_lea.vmem [#allocation3], %s265
        // Predicated region
        $region41: #{tpu_custom_call.1} parent=39 // pred_check
          %p267 = pneg %p57
        $region42: #{tpu_custom_call.1} parent=39 // pred_check_branch
          %269 = sbr.rel (%p267) target = $region44
        $region43: #{tpu_custom_call.1} parent=39 // pred_region
          %270 = dma.done %s263, 4096
        $region44: #{tpu_custom_call.1} parent=39 // pred_fallthru
          _
        // Predicated region
        $region45: #{tpu_custom_call.1} parent=39 // pred_check
          %p271 = pneg %p78
        $region46: #{tpu_custom_call.1} parent=39 // pred_check_branch
          %273 = sbr.rel (%p271) target = $region48
        $region47: #{tpu_custom_call.1} parent=39 // pred_region
          %274 = dma.done [#allocation7], 64
        $region48: #{tpu_custom_call.1} parent=39 // pred_fallthru
          _
        // Predicated region
        $region49: #{tpu_custom_call.1} parent=39 // pred_check
          %p275 = pneg %p99
        $region50: #{tpu_custom_call.1} parent=39 // pred_check_branch
          %277 = sbr.rel (%p275) target = $region52
        $region51: #{tpu_custom_call.1} parent=39 // pred_region
          %278 = dma.done [#allocation7], 16
        $region52: #{tpu_custom_call.1} parent=39 // pred_fallthru
          _
        // Predicated region
        $region53: #{tpu_custom_call.1} parent=39 // pred_check
          %p279 = pneg %p120
        $region54: #{tpu_custom_call.1} parent=39 // pred_check_branch
          %281 = sbr.rel (%p279) target = $region56
        $region55: #{tpu_custom_call.1} parent=39 // pred_region
          %282 = dma.done [#allocation10], 256
        $region56: #{tpu_custom_call.1} parent=39 // pred_fallthru
          _
        // Predicated region
        $region57: #{tpu_custom_call.1} parent=39 // pred_check
          %p283 = pneg %p141
        $region58: #{tpu_custom_call.1} parent=39 // pred_check_branch
          %285 = sbr.rel (%p283) target = $region60
        $region59: #{tpu_custom_call.1} parent=39 // pred_region
          %286 = dma.done [#allocation10], 16
        $region60: #{tpu_custom_call.1} parent=39 // pred_fallthru
          _
        %s287 = sand.u32 %s44, 1
        %s288 = scalar_lea.sflag [#allocation4], %s287
        %s289 = sand.u32 %s44, 1
        %s290 = smul.addr %s289, 256
        %s291 = scalar_lea.vmem [#allocation3], %s290
        %p292 = pneg %p57
        %p293 = pneg %p54
        %p294 = pneg %p78
        %p295 = pneg %p75
        %p296 = pneg %p99
        %p297 = pneg %p96
        %p298 = pneg %p120
        %p299 = pneg %p117
        %p300 = pneg %p141
        %p301 = pneg %p138
        %p302 = pneg %p169
        %p303 = pneg %p166
        %s304 = sand.u32 %s156, 1
        %s305 = scalar_lea.sflag [#allocation5], %s304
        %s306 = sand.u32 %s156, 1
        %s307 = smul.addr %s306, 128
        %s308 = scalar_lea.vmem [#allocation12], %s307
        %s309 = smul.u32 8, %s29
        %s310 = smul.u32 %s29, 8
        %v311 = vld [vmem:[#allocation6] sm:$0xf]
        %v312 = vld [vmem:[#allocation8] sm:$0x1]
        %vm313 = vcmask 64512
        %314 = vst.msk [vmem:[#allocation2] sm:$0xff] %vm313, 0.0
        %315 = vst.msk [vmem:[#allocation2 + $0x8] sm:$0xff] %vm313, 0.0
        %vm316 = vcmask 58368
        %317 = vst.msk [vmem:[#allocation2 + $0x10] sm:$0x3] %vm316, 0.0
        %318 = vst.msk [vmem:[#allocation2 + $0x18] sm:$0xff] %vm313, 0.0
        %319 = vst.msk [vmem:[#allocation2 + $0x20] sm:$0xff] %vm313, 0.0
        %320 = vst.msk [vmem:[#allocation2 + $0x28] sm:$0x3] %vm316, 0.0
        %321 = vst.msk [vmem:[#allocation2 + $0x30] sm:$0xff] %vm313, 0.0
        %322 = vst.msk [vmem:[#allocation2 + $0x38] sm:$0xff] %vm313, 0.0
        %323 = vst.msk [vmem:[#allocation2 + $0x40] sm:$0x3] %vm316, 0.0
        %324 = vst.msk [vmem:[#allocation2 + $0x48] sm:$0xff] %vm313, 0.0
        %325 = vst.msk [vmem:[#allocation2 + $0x50] sm:$0xff] %vm313, 0.0
        %326 = vst.msk [vmem:[#allocation2 + $0x58] sm:$0x3] %vm316, 0.0
        %327 = vst.msk [vmem:[#allocation2 + $0x60] sm:$0xff] %vm313, 0.0
        %328 = vst.msk [vmem:[#allocation2 + $0x68] sm:$0xff] %vm313, 0.0
        %329 = vst.msk [vmem:[#allocation2 + $0x70] sm:$0x3] %vm316, 0.0
        %330 = vst.msk [vmem:[#allocation2 + $0x78] sm:$0xff] %vm313, 0.0
        %331 = vst.msk [vmem:[#allocation2 + $0x80] sm:$0xff] %vm313, 0.0
        %332 = vst.msk [vmem:[#allocation2 + $0x88] sm:$0x3] %vm316, 0.0
        %333 = vst.msk [vmem:[#allocation2 + $0x90] sm:$0xff] %vm313, 0.0
        %334 = vst.msk [vmem:[#allocation2 + $0x98] sm:$0xff] %vm313, 0.0
        %335 = vst.msk [vmem:[#allocation2 + $0xa0] sm:$0x3] %vm316, 0.0
        %336 = vst.msk [vmem:[#allocation2 + $0xa8] sm:$0xff] %vm313, 0.0
        %337 = vst.msk [vmem:[#allocation2 + $0xb0] sm:$0xff] %vm313, 0.0
        %338 = vst.msk [vmem:[#allocation2 + $0xb8] sm:$0x3] %vm316, 0.0
        %339 = vst.msk [vmem:[#allocation2 + $0xc0] sm:$0xff] %vm313, 0.0
        %340 = vst.msk [vmem:[#allocation2 + $0xc8] sm:$0xff] %vm313, 0.0
        %341 = vst.msk [vmem:[#allocation2 + $0xd0] sm:$0x3] %vm316, 0.0
        %342 = vst.msk [vmem:[#allocation2 + $0xd8] sm:$0xff] %vm313, 0.0
        %343 = vst.msk [vmem:[#allocation2 + $0xe0] sm:$0xff] %vm313, 0.0
        %344 = vst.msk [vmem:[#allocation2 + $0xe8] sm:$0x3] %vm316, 0.0
        %s345 = smul.u32 %s310, 16
        %s346 = scalar_lea.vmem %s266, %s345 [#allocation3]
        %v347 = vld [vmem:[%s346] sm:$0xff]
        %v348 = vld [vmem:[%s346 + $0x8] sm:$0xff]
        %v349 = vld [vmem:[%s346 + $0x10] sm:$0xff]
        %v350 = vld [vmem:[%s346 + $0x18] sm:$0xff]
        %v351 = vld [vmem:[%s346 + $0x20] sm:$0xff]
        %v352 = vld [vmem:[%s346 + $0x28] sm:$0xff]
        %v353 = vld [vmem:[%s346 + $0x30] sm:$0xff]
        %v354 = vld [vmem:[%s346 + $0x38] sm:$0xff]
        %v355 = vld [vmem:[%s346 + $0x40] sm:$0xff]
        %v356 = vld [vmem:[%s346 + $0x48] sm:$0xff]
        %v357 = vld [vmem:[%s346 + $0x50] sm:$0xff]
        %v358 = vld [vmem:[%s346 + $0x58] sm:$0xff]
        %v359 = vld [vmem:[%s346 + $0x60] sm:$0xff]
        %v360 = vld [vmem:[%s346 + $0x68] sm:$0xff]
        %v361 = vld [vmem:[%s346 + $0x70] sm:$0xff]
        %v362 = vld [vmem:[%s346 + $0x78] sm:$0xff]
        %v364 = vlaneseq
        %v365 = vshrl.u32 %v364, 7
        %v366 = vsub.s32 0, %v365
        %v367 = vrot.slane %v312, %v366
        %vm369 = vcmask 31744
        %v371 = vsel %vm369, %v347, 0
        %v374 = vsel %vm369, %v348, 0
        %v377 = vsel %vm369, %v349, 0
        %v380 = vsel %vm369, %v350, 0
        %v383 = vsel %vm369, %v351, 0
        %v386 = vsel %vm369, %v352, 0
        %v389 = vsel %vm369, %v353, 0
        %v392 = vsel %vm369, %v354, 0
        %v395 = vsel %vm369, %v355, 0
        %v398 = vsel %vm369, %v356, 0
        %v401 = vsel %vm369, %v357, 0
        %v404 = vsel %vm369, %v358, 0
        %v407 = vsel %vm369, %v359, 0
        %v410 = vsel %vm369, %v360, 0
        %v413 = vsel %vm369, %v361, 0
        %v416 = vsel %vm369, %v362, 0
        %vm418 = vcmask 1043456
        %v420 = vsel %vm418, %v311, 0
        %422 = vmatprep.subr.mxu0 0.0
        %423 = vmatpush1.msra.mxu0 %v420
        %424 = vmatprep.subr.mxu0 0.0
        %425 = vmatpush1.msra.mxu0 0.0
        %426 = vmatprep.subr.mxu0 0.0
        %427 = vmatpush1.msra.mxu0 0.0
        %428 = vmatprep.subr.mxu0 0.0
        %429 = vmatpush1.msra.mxu0 0.0
        %430 = vmatprep.subr.mxu0 0.0
        %431 = vmatpush1.msra.mxu0 0.0
        %432 = vmatprep.subr.mxu0 0.0
        %433 = vmatpush1.msra.mxu0 0.0
        %434 = vmatprep.subr.mxu0 0.0
        %435 = vmatpush1.msra.mxu0 0.0
        %436 = vmatprep.subr.mxu0 0.0
        %437 = vmatpush1.msra.mxu0 0.0
        %438 = vmatprep.subr.mxu0 0.0
        %439 = vmatpush1.msra.mxu0 0.0
        %440 = vmatprep.subr.mxu0 0.0
        %441 = vmatpush1.msra.mxu0 0.0
        %442 = vmatprep.subr.mxu0 0.0
        %443 = vmatpush1.msra.mxu0 0.0
        %444 = vmatprep.subr.mxu0 0.0
        %445 = vmatpush1.msra.mxu0 0.0
        %446 = vmatprep.subr.mxu0 0.0
        %447 = vmatpush1.msra.mxu0 0.0
        %448 = vmatprep.subr.mxu0 0.0
        %449 = vmatpush1.msra.mxu0 0.0
        %450 = vmatprep.subr.mxu0 0.0
        %451 = vmatpush1.msra.mxu0 0.0
        %452 = vmatprep.subr.mxu0 0.0
        %453 = vmatpush1.msra.mxu0 0.0
        %454 = vmatprep.subr.mxu0 0.0
        %455 = vmatpush1.msra.mxu0 0.0
        %456 = vmatprep.subr.mxu0 0.0
        %457 = vmatpush1.msra.mxu0 0.0
        %458 = vmatprep.subr.mxu0 0.0
        %459 = vmatpush1.msra.mxu0 0.0
        %460 = vmatprep.subr.mxu0 0.0
        %461 = vmatpush1.msra.mxu0 0.0
        %462 = vmatprep.subr.mxu0 0.0
        %463 = vmatpush1.msra.mxu0 0.0
        %464 = vmatprep.subr.mxu0 0.0
        %465 = vmatpush1.msra.mxu0 0.0
        %466 = vmatprep.subr.mxu0 0.0
        %467 = vmatpush1.msra.mxu0 0.0
        %468 = vmatprep.subr.mxu0 0.0
        %469 = vmatpush1.msra.mxu0 0.0
        %470 = vmatprep.subr.mxu0 0.0
        %471 = vmatpush1.msra.mxu0 0.0
        %472 = vmatprep.subr.mxu0 0.0
        %473 = vmatpush1.msra.mxu0 0.0
        %474 = vmatprep.subr.mxu0 0.0
        %475 = vmatpush1.msra.mxu0 0.0
        %476 = vmatprep.subr.mxu0 0.0
        %477 = vmatpush1.msra.mxu0 0.0
        %478 = vmatprep.subr.mxu0 0.0
        %479 = vmatpush1.msra.mxu0 0.0
        %480 = vmatprep.subr.mxu0 0.0
        %481 = vmatpush1.msra.mxu0 0.0
        %482 = vmatprep.subr.mxu0 0.0
        %483 = vmatpush1.msra.mxu0 0.0
        %484 = vmatprep.subr.mxu0 0.0
        %485 = vmatpush1.msra.mxu0 0.0
        %486 = vmatprep.mubr.f32.mxu0 0.0
        %487 = vmatmul.mubr.f32.gmra.mrb[0].mxu0 %v371
        %v488 = vpop.f32.mrb[0].mxu0
        %v489 = vadd.f32 %v367, %v488
        %v490 = vpop.f32.mrb[0].mxu0
        %491 = vmatprep.mubr.f32.mxu0 0.0
        %492 = vmatmul.mubr.f32.gmra.mrb[0].mxu0 %v374
        %v493 = vpop.f32.mrb[0].mxu0
        %v494 = vadd.f32 %v367, %v493
        %v495 = vpop.f32.mrb[0].mxu0
        %496 = vmatprep.mubr.f32.mxu0 0.0
        %497 = vmatmul.mubr.f32.gmra.mrb[0].mxu0 %v377
        %v498 = vpop.f32.mrb[0].mxu0
        %v499 = vadd.f32 %v367, %v498
        %v500 = vpop.f32.mrb[0].mxu0
        %501 = vmatprep.mubr.f32.mxu0 0.0
        %502 = vmatmul.mubr.f32.gmra.mrb[0].mxu0 %v380
        %v503 = vpop.f32.mrb[0].mxu0
        %v504 = vadd.f32 %v367, %v503
        %v505 = vpop.f32.mrb[0].mxu0
        %506 = vmatprep.mubr.f32.mxu0 0.0
        %507 = vmatmul.mubr.f32.gmra.mrb[0].mxu0 %v383
        %v508 = vpop.f32.mrb[0].mxu0
        %v509 = vadd.f32 %v367, %v508
        %v510 = vpop.f32.mrb[0].mxu0
        %511 = vmatprep.mubr.f32.mxu0 0.0
        %512 = vmatmul.mubr.f32.gmra.mrb[0].mxu0 %v386
        %v513 = vpop.f32.mrb[0].mxu0
        %v514 = vadd.f32 %v367, %v513
        %v515 = vpop.f32.mrb[0].mxu0
        %516 = vmatprep.mubr.f32.mxu0 0.0
        %517 = vmatmul.mubr.f32.gmra.mrb[0].mxu0 %v389
        %v518 = vpop.f32.mrb[0].mxu0
        %v519 = vadd.f32 %v367, %v518
        %v520 = vpop.f32.mrb[0].mxu0
        %521 = vmatprep.mubr.f32.mxu0 0.0
        %522 = vmatmul.mubr.f32.gmra.mrb[0].mxu0 %v392
        %v523 = vpop.f32.mrb[0].mxu0
        %v524 = vadd.f32 %v367, %v523
        %v525 = vpop.f32.mrb[0].mxu0
        %526 = vmatprep.mubr.f32.mxu0 0.0
        %527 = vmatmul.mubr.f32.gmra.mrb[0].mxu0 %v395
        %v528 = vpop.f32.mrb[0].mxu0
        %v529 = vadd.f32 %v367, %v528
        %v530 = vpop.f32.mrb[0].mxu0
        %531 = vmatprep.mubr.f32.mxu0 0.0
        %532 = vmatmul.mubr.f32.gmra.mrb[0].mxu0 %v398
        %v533 = vpop.f32.mrb[0].mxu0
        %v534 = vadd.f32 %v367, %v533
        %v535 = vpop.f32.mrb[0].mxu0
        %536 = vmatprep.mubr.f32.mxu0 0.0
        %537 = vmatmul.mubr.f32.gmra.mrb[0].mxu0 %v401
        %v538 = vpop.f32.mrb[0].mxu0
        %v539 = vadd.f32 %v367, %v538
        %v540 = vpop.f32.mrb[0].mxu0
        %541 = vmatprep.mubr.f32.mxu0 0.0
        %542 = vmatmul.mubr.f32.gmra.mrb[0].mxu0 %v404
        %v543 = vpop.f32.mrb[0].mxu0
        %v544 = vadd.f32 %v367, %v543
        %v545 = vpop.f32.mrb[0].mxu0
        %546 = vmatprep.mubr.f32.mxu0 0.0
        %547 = vmatmul.mubr.f32.gmra.mrb[0].mxu0 %v407
        %v548 = vpop.f32.mrb[0].mxu0
        %v549 = vadd.f32 %v367, %v548
        %v550 = vpop.f32.mrb[0].mxu0
        %551 = vmatprep.mubr.f32.mxu0 0.0
        %552 = vmatmul.mubr.f32.gmra.mrb[0].mxu0 %v410
        %v553 = vpop.f32.mrb[0].mxu0
        %v554 = vadd.f32 %v367, %v553
        %v555 = vpop.f32.mrb[0].mxu0
        %556 = vmatprep.mubr.f32.mxu0 0.0
        %557 = vmatmul.mubr.f32.gmra.mrb[0].mxu0 %v413
        %v558 = vpop.f32.mrb[0].mxu0
        %v559 = vadd.f32 %v367, %v558
        %v560 = vpop.f32.mrb[0].mxu0
        %561 = vmatprep.mubr.f32.mxu0 0.0
        %562 = vmatmul.mubr.f32.gmra.mrb[0].mxu0 %v416
        %v563 = vpop.f32.mrb[0].mxu0
        %v564 = vadd.f32 %v367, %v563
        %v565 = vpop.f32.mrb[0].mxu0
        %566 = vdwg.mxu0
        %s567 = scalar_lea.vmem [#allocation2], 24
        %568 = vst.msk [vmem:[%s567 + $0x1] sm:$0xff] %vm313, %v489
        %569 = vst.msk [vmem:[%s567 + $0x9] sm:$0xff] %vm313, %v494
        %570 = vst.msk [vmem:[%s567 + $0x19] sm:$0xff] %vm313, %v499
        %571 = vst.msk [vmem:[%s567 + $0x21] sm:$0xff] %vm313, %v504
        %572 = vst.msk [vmem:[%s567 + $0x31] sm:$0xff] %vm313, %v509
        %573 = vst.msk [vmem:[%s567 + $0x39] sm:$0xff] %vm313, %v514
        %574 = vst.msk [vmem:[%s567 + $0x49] sm:$0xff] %vm313, %v519
        %575 = vst.msk [vmem:[%s567 + $0x51] sm:$0xff] %vm313, %v524
        %576 = vst.msk [vmem:[%s567 + $0x61] sm:$0xff] %vm313, %v529
        %577 = vst.msk [vmem:[%s567 + $0x69] sm:$0xff] %vm313, %v534
        %578 = vst.msk [vmem:[%s567 + $0x79] sm:$0xff] %vm313, %v539
        %579 = vst.msk [vmem:[%s567 + $0x81] sm:$0xff] %vm313, %v544
        %580 = vst.msk [vmem:[%s567 + $0x91] sm:$0xff] %vm313, %v549
        %581 = vst.msk [vmem:[%s567 + $0x99] sm:$0xff] %vm313, %v554
        %582 = vst.msk [vmem:[%s567 + $0xa9] sm:$0xff] %vm313, %v559
        %583 = vst.msk [vmem:[%s567 + $0xb1] sm:$0xff] %vm313, %v564
        %p584 = scmp.gt.s32.totalorder %s29, 0
        // Predicated region
        $region61: #{tpu_custom_call.1} parent=39 // pred_check
          %p585 = pneg %p584
        $region62: #{tpu_custom_call.1} parent=39 // pred_check_branch
          %587 = sbr.rel (%p585) target = $region64
        $region63: #{tpu_custom_call.1} parent=39 // pred_region
          %s588 = ssub.s32 %s310, 1
          %s589 = smul.u32 %s588, 16
          %s590 = scalar_lea.vmem %s266, %s589 [#allocation3]
          %v591 = vld [vmem:[%s590] sm:$0xff]
          %v592 = vld [vmem:[%s590 + $0x8] sm:$0xff]
          %v594 = vsel %vm369, %v591, 0
          %v597 = vsel %vm369, %v592, 0
          %599 = vmatprep.subr.mxu0 0.0
          %600 = vmatpush1.msra.mxu0 %v420
          %601 = vmatprep.subr.mxu0 0.0
          %602 = vmatpush1.msra.mxu0 0.0
          %603 = vmatprep.subr.mxu0 0.0
          %604 = vmatpush1.msra.mxu0 0.0
          %605 = vmatprep.subr.mxu0 0.0
          %606 = vmatpush1.msra.mxu0 0.0
          %607 = vmatprep.subr.mxu0 0.0
          %608 = vmatpush1.msra.mxu0 0.0
          %609 = vmatprep.subr.mxu0 0.0
          %610 = vmatpush1.msra.mxu0 0.0
          %611 = vmatprep.subr.mxu0 0.0
          %612 = vmatpush1.msra.mxu0 0.0
          %613 = vmatprep.subr.mxu0 0.0
          %614 = vmatpush1.msra.mxu0 0.0
          %615 = vmatprep.subr.mxu0 0.0
          %616 = vmatpush1.msra.mxu0 0.0
          %617 = vmatprep.subr.mxu0 0.0
          %618 = vmatpush1.msra.mxu0 0.0
          %619 = vmatprep.subr.mxu0 0.0
          %620 = vmatpush1.msra.mxu0 0.0
          %621 = vmatprep.subr.mxu0 0.0
          %622 = vmatpush1.msra.mxu0 0.0
          %623 = vmatprep.subr.mxu0 0.0
          %624 = vmatpush1.msra.mxu0 0.0
          %625 = vmatprep.subr.mxu0 0.0
          %626 = vmatpush1.msra.mxu0 0.0
          %627 = vmatprep.subr.mxu0 0.0
          %628 = vmatpush1.msra.mxu0 0.0
          %629 = vmatprep.subr.mxu0 0.0
          %630 = vmatpush1.msra.mxu0 0.0
          %631 = vmatprep.subr.mxu0 0.0
          %632 = vmatpush1.msra.mxu0 0.0
          %633 = vmatprep.subr.mxu0 0.0
          %634 = vmatpush1.msra.mxu0 0.0
          %635 = vmatprep.subr.mxu0 0.0
          %636 = vmatpush1.msra.mxu0 0.0
          %637 = vmatprep.subr.mxu0 0.0
          %638 = vmatpush1.msra.mxu0 0.0
          %639 = vmatprep.subr.mxu0 0.0
          %640 = vmatpush1.msra.mxu0 0.0
          %641 = vmatprep.subr.mxu0 0.0
          %642 = vmatpush1.msra.mxu0 0.0
          %643 = vmatprep.subr.mxu0 0.0
          %644 = vmatpush1.msra.mxu0 0.0
          %645 = vmatprep.subr.mxu0 0.0
          %646 = vmatpush1.msra.mxu0 0.0
          %647 = vmatprep.subr.mxu0 0.0
          %648 = vmatpush1.msra.mxu0 0.0
          %649 = vmatprep.subr.mxu0 0.0
          %650 = vmatpush1.msra.mxu0 0.0
          %651 = vmatprep.subr.mxu0 0.0
          %652 = vmatpush1.msra.mxu0 0.0
          %653 = vmatprep.subr.mxu0 0.0
          %654 = vmatpush1.msra.mxu0 0.0
          %655 = vmatprep.subr.mxu0 0.0
          %656 = vmatpush1.msra.mxu0 0.0
          %657 = vmatprep.subr.mxu0 0.0
          %658 = vmatpush1.msra.mxu0 0.0
          %659 = vmatprep.subr.mxu0 0.0
          %660 = vmatpush1.msra.mxu0 0.0
          %661 = vmatprep.subr.mxu0 0.0
          %662 = vmatpush1.msra.mxu0 0.0
          %663 = vmatprep.mubr.f32.mxu0 0.0
          %664 = vmatmul.mubr.f32.gmra.mrb[0].mxu0 %v594
          %v665 = vpop.f32.mrb[0].mxu0
          %v666 = vadd.f32 %v367, %v665
          %v667 = vpop.f32.mrb[0].mxu0
          %668 = vmatprep.mubr.f32.mxu0 0.0
          %669 = vmatmul.mubr.f32.gmra.mrb[0].mxu0 %v597
          %v670 = vpop.f32.mrb[0].mxu0
          %v671 = vadd.f32 %v367, %v670
          %v672 = vpop.f32.mrb[0].mxu0
          %673 = vdwg.mxu0
          %674 = vst.msk [vmem:[#allocation2 + $0x1] sm:$0xff] %vm313, %v666
          %675 = vst.msk [vmem:[#allocation2 + $0x9] sm:$0xff] %vm313, %v671
        $region64: #{tpu_custom_call.1} parent=39 // pred_fallthru
          _
        %p676 = scmp.lt.s32.totalorder %s29, 1
        // Predicated region
        $region65: #{tpu_custom_call.1} parent=39 // pred_check
          %p677 = pneg %p676
        $region66: #{tpu_custom_call.1} parent=39 // pred_check_branch
          %679 = sbr.rel (%p677) target = $region68
        $region67: #{tpu_custom_call.1} parent=39 // pred_region
          %s680 = sadd.s32 %s310, 8
          %s681 = smul.u32 %s680, 16
          %s682 = scalar_lea.vmem %s266, %s681 [#allocation3]
          %v683 = vld [vmem:[%s682] sm:$0xff]
          %v684 = vld [vmem:[%s682 + $0x8] sm:$0xff]
          %v686 = vsel %vm369, %v683, 0
          %v689 = vsel %vm369, %v684, 0
          %691 = vmatprep.subr.mxu0 0.0
          %692 = vmatpush1.msra.mxu0 %v420
          %693 = vmatprep.subr.mxu0 0.0
          %694 = vmatpush1.msra.mxu0 0.0
          %695 = vmatprep.subr.mxu0 0.0
          %696 = vmatpush1.msra.mxu0 0.0
          %697 = vmatprep.subr.mxu0 0.0
          %698 = vmatpush1.msra.mxu0 0.0
          %699 = vmatprep.subr.mxu0 0.0
          %700 = vmatpush1.msra.mxu0 0.0
          %701 = vmatprep.subr.mxu0 0.0
          %702 = vmatpush1.msra.mxu0 0.0
          %703 = vmatprep.subr.mxu0 0.0
          %704 = vmatpush1.msra.mxu0 0.0
          %705 = vmatprep.subr.mxu0 0.0
          %706 = vmatpush1.msra.mxu0 0.0
          %707 = vmatprep.subr.mxu0 0.0
          %708 = vmatpush1.msra.mxu0 0.0
          %709 = vmatprep.subr.mxu0 0.0
          %710 = vmatpush1.msra.mxu0 0.0
          %711 = vmatprep.subr.mxu0 0.0
          %712 = vmatpush1.msra.mxu0 0.0
          %713 = vmatprep.subr.mxu0 0.0
          %714 = vmatpush1.msra.mxu0 0.0
          %715 = vmatprep.subr.mxu0 0.0
          %716 = vmatpush1.msra.mxu0 0.0
          %717 = vmatprep.subr.mxu0 0.0
          %718 = vmatpush1.msra.mxu0 0.0
          %719 = vmatprep.subr.mxu0 0.0
          %720 = vmatpush1.msra.mxu0 0.0
          %721 = vmatprep.subr.mxu0 0.0
          %722 = vmatpush1.msra.mxu0 0.0
          %723 = vmatprep.subr.mxu0 0.0
          %724 = vmatpush1.msra.mxu0 0.0
          %725 = vmatprep.subr.mxu0 0.0
          %726 = vmatpush1.msra.mxu0 0.0
          %727 = vmatprep.subr.mxu0 0.0
          %728 = vmatpush1.msra.mxu0 0.0
          %729 = vmatprep.subr.mxu0 0.0
          %730 = vmatpush1.msra.mxu0 0.0
          %731 = vmatprep.subr.mxu0 0.0
          %732 = vmatpush1.msra.mxu0 0.0
          %733 = vmatprep.subr.mxu0 0.0
          %734 = vmatpush1.msra.mxu0 0.0
          %735 = vmatprep.subr.mxu0 0.0
          %736 = vmatpush1.msra.mxu0 0.0
          %737 = vmatprep.subr.mxu0 0.0
          %738 = vmatpush1.msra.mxu0 0.0
          %739 = vmatprep.subr.mxu0 0.0
          %740 = vmatpush1.msra.mxu0 0.0
          %741 = vmatprep.subr.mxu0 0.0
          %742 = vmatpush1.msra.mxu0 0.0
          %743 = vmatprep.subr.mxu0 0.0
          %744 = vmatpush1.msra.mxu0 0.0
          %745 = vmatprep.subr.mxu0 0.0
          %746 = vmatpush1.msra.mxu0 0.0
          %747 = vmatprep.subr.mxu0 0.0
          %748 = vmatpush1.msra.mxu0 0.0
          %749 = vmatprep.subr.mxu0 0.0
          %750 = vmatpush1.msra.mxu0 0.0
          %751 = vmatprep.subr.mxu0 0.0
          %752 = vmatpush1.msra.mxu0 0.0
          %753 = vmatprep.subr.mxu0 0.0
          %754 = vmatpush1.msra.mxu0 0.0
          %755 = vmatprep.mubr.f32.mxu0 0.0
          %756 = vmatmul.mubr.f32.gmra.mrb[0].mxu0 %v686
          %v757 = vpop.f32.mrb[0].mxu0
          %v758 = vadd.f32 %v367, %v757
          %v759 = vpop.f32.mrb[0].mxu0
          %760 = vmatprep.mubr.f32.mxu0 0.0
          %761 = vmatmul.mubr.f32.gmra.mrb[0].mxu0 %v689
          %v762 = vpop.f32.mrb[0].mxu0
          %v763 = vadd.f32 %v367, %v762
          %v764 = vpop.f32.mrb[0].mxu0
          %765 = vdwg.mxu0
          %s766 = scalar_lea.vmem [#allocation2], 216
          %767 = vst.msk [vmem:[%s766 + $0x1] sm:$0xff] %vm313, %v758
          %768 = vst.msk [vmem:[%s766 + $0x9] sm:$0xff] %vm313, %v763
        $region68: #{tpu_custom_call.1} parent=39 // pred_fallthru
          _
        %v769 = vld [vmem:[#allocation9] sm:$0xff]
        %v770 = vld [vmem:[#allocation9 + $0x8] sm:$0x1]
        %v771 = vld [vmem:[#allocation11] sm:$0x1]
        %v773 = vlaneseq
        %v774 = vshrl.u32 %v773, 7
        %v775 = vsub.s32 0, %v774
        %v776 = vrot.slane %v771, %v775
        %777 = vrot.lane.b32.xlu0 %v776, 8
        %v778 = vpop.permute.xlu0 %777
        %v780 = vadd.f32 %v489, %v778
        %v781 = vadd.f32 %v494, %v778
        %v782 = vadd.f32 %v499, %v778
        %v783 = vadd.f32 %v504, %v778
        %v784 = vadd.f32 %v509, %v778
        %v785 = vadd.f32 %v514, %v778
        %v786 = vadd.f32 %v519, %v778
        %v787 = vadd.f32 %v524, %v778
        %v788 = vadd.f32 %v529, %v778
        %v789 = vadd.f32 %v534, %v778
        %v790 = vadd.f32 %v539, %v778
        %v791 = vadd.f32 %v544, %v778
        %v792 = vadd.f32 %v549, %v778
        %v793 = vadd.f32 %v554, %v778
        %v794 = vadd.f32 %v559, %v778
        %v795 = vadd.f32 %v564, %v778
        %v796 = vld [vmem:[#allocation2] sm:$0xff]
        %v797 = vld [vmem:[#allocation2 + $0x8] sm:$0xff]
        %v798 = vld [vmem:[#allocation2 + $0x18] sm:$0xff]
        %v799 = vld [vmem:[#allocation2 + $0x20] sm:$0xff]
        %v800 = vld [vmem:[#allocation2 + $0x30] sm:$0xff]
        %v801 = vld [vmem:[#allocation2 + $0x38] sm:$0xff]
        %v802 = vld [vmem:[#allocation2 + $0x48] sm:$0xff]
        %v803 = vld [vmem:[#allocation2 + $0x50] sm:$0xff]
        %v804 = vld [vmem:[#allocation2 + $0x60] sm:$0xff]
        %v805 = vld [vmem:[#allocation2 + $0x68] sm:$0xff]
        %v806 = vld [vmem:[#allocation2 + $0x78] sm:$0xff]
        %v807 = vld [vmem:[#allocation2 + $0x80] sm:$0xff]
        %v808 = vld [vmem:[#allocation2 + $0x90] sm:$0xff]
        %v809 = vld [vmem:[#allocation2 + $0x98] sm:$0xff]
        %v810 = vld [vmem:[#allocation2 + $0xa8] sm:$0xff]
        %v811 = vld [vmem:[#allocation2 + $0xb0] sm:$0xff]
        %v812 = vlaneseq
        %v813 = vshrl.u32 %v812, 7
        %v814 = vsub.s32 0, %v813
        %v815 = vrot.slane %v769, %v814
        %v816 = vmul.f32 %v796, %v815
        %v817 = vmul.f32 %v797, %v815
        %v818 = vmul.f32 %v798, %v815
        %v819 = vmul.f32 %v799, %v815
        %v820 = vmul.f32 %v800, %v815
        %v821 = vmul.f32 %v801, %v815
        %v822 = vmul.f32 %v802, %v815
        %v823 = vmul.f32 %v803, %v815
        %v824 = vmul.f32 %v804, %v815
        %v825 = vmul.f32 %v805, %v815
        %v826 = vmul.f32 %v806, %v815
        %v827 = vmul.f32 %v807, %v815
        %v828 = vmul.f32 %v808, %v815
        %v829 = vmul.f32 %v809, %v815
        %v830 = vmul.f32 %v810, %v815
        %v831 = vmul.f32 %v811, %v815
        %848 = vrot.lane.b32.xlu0 %v816, 8
        %v849 = vpop.permute.xlu0 %848
        %850 = vrot.lane.b32.xlu0 %v817, 8
        %v851 = vpop.permute.xlu0 %850
        %852 = vrot.lane.b32.xlu0 %v818, 8
        %v853 = vpop.permute.xlu0 %852
        %854 = vrot.lane.b32.xlu0 %v819, 8
        %v855 = vpop.permute.xlu0 %854
        %856 = vrot.lane.b32.xlu0 %v820, 8
        %v857 = vpop.permute.xlu0 %856
        %858 = vrot.lane.b32.xlu0 %v821, 8
        %v859 = vpop.permute.xlu0 %858
        %860 = vrot.lane.b32.xlu0 %v822, 8
        %v861 = vpop.permute.xlu0 %860
        %862 = vrot.lane.b32.xlu0 %v823, 8
        %v863 = vpop.permute.xlu0 %862
        %864 = vrot.lane.b32.xlu0 %v824, 8
        %v865 = vpop.permute.xlu0 %864
        %866 = vrot.lane.b32.xlu0 %v825, 8
        %v867 = vpop.permute.xlu0 %866
        %868 = vrot.lane.b32.xlu0 %v826, 8
        %v869 = vpop.permute.xlu0 %868
        %870 = vrot.lane.b32.xlu0 %v827, 8
        %v871 = vpop.permute.xlu0 %870
        %872 = vrot.lane.b32.xlu0 %v828, 8
        %v873 = vpop.permute.xlu0 %872
        %874 = vrot.lane.b32.xlu0 %v829, 8
        %v875 = vpop.permute.xlu0 %874
        %876 = vrot.lane.b32.xlu0 %v830, 8
        %v877 = vpop.permute.xlu0 %876
        %878 = vrot.lane.b32.xlu0 %v831, 8
        %v879 = vpop.permute.xlu0 %878
        %v896 = vadd.f32 %v780, %v849
        %v897 = vadd.f32 %v781, %v851
        %v898 = vadd.f32 %v782, %v853
        %v899 = vadd.f32 %v783, %v855
        %v900 = vadd.f32 %v784, %v857
        %v901 = vadd.f32 %v785, %v859
        %v902 = vadd.f32 %v786, %v861
        %v903 = vadd.f32 %v787, %v863
        %v904 = vadd.f32 %v788, %v865
        %v905 = vadd.f32 %v789, %v867
        %v906 = vadd.f32 %v790, %v869
        %v907 = vadd.f32 %v791, %v871
        %v908 = vadd.f32 %v792, %v873
        %v909 = vadd.f32 %v793, %v875
        %v910 = vadd.f32 %v794, %v877
        %v911 = vadd.f32 %v795, %v879
        %v912 = vld [vmem:[#allocation2 + $0x1] sm:$0xff]
        %v913 = vld [vmem:[#allocation2 + $0x9] sm:$0xff]
        %v914 = vld [vmem:[#allocation2 + $0x19] sm:$0xff]
        %v915 = vld [vmem:[#allocation2 + $0x21] sm:$0xff]
        %v916 = vld [vmem:[#allocation2 + $0x31] sm:$0xff]
        %v917 = vld [vmem:[#allocation2 + $0x39] sm:$0xff]
        %v918 = vld [vmem:[#allocation2 + $0x49] sm:$0xff]
        %v919 = vld [vmem:[#allocation2 + $0x51] sm:$0xff]
        %v920 = vld [vmem:[#allocation2 + $0x61] sm:$0xff]
        %v921 = vld [vmem:[#allocation2 + $0x69] sm:$0xff]
        %v922 = vld [vmem:[#allocation2 + $0x79] sm:$0xff]
        %v923 = vld [vmem:[#allocation2 + $0x81] sm:$0xff]
        %v924 = vld [vmem:[#allocation2 + $0x91] sm:$0xff]
        %v925 = vld [vmem:[#allocation2 + $0x99] sm:$0xff]
        %v926 = vld [vmem:[#allocation2 + $0xa9] sm:$0xff]
        %v927 = vld [vmem:[#allocation2 + $0xb1] sm:$0xff]
        %v928 = vlaneseq
        %v929 = vshrl.u32 %v928, 7
        %v930 = vsub.s32 1, %v929
        %v931 = vrot.slane %v769, %v930
        %v932 = vmul.f32 %v912, %v931
        %v933 = vmul.f32 %v913, %v931
        %v934 = vmul.f32 %v914, %v931
        %v935 = vmul.f32 %v915, %v931
        %v936 = vmul.f32 %v916, %v931
        %v937 = vmul.f32 %v917, %v931
        %v938 = vmul.f32 %v918, %v931
        %v939 = vmul.f32 %v919, %v931
        %v940 = vmul.f32 %v920, %v931
        %v941 = vmul.f32 %v921, %v931
        %v942 = vmul.f32 %v922, %v931
        %v943 = vmul.f32 %v923, %v931
        %v944 = vmul.f32 %v924, %v931
        %v945 = vmul.f32 %v925, %v931
        %v946 = vmul.f32 %v926, %v931
        %v947 = vmul.f32 %v927, %v931
        %964 = vrot.lane.b32.xlu0 %v932, 8
        %v965 = vpop.permute.xlu0 %964
        %966 = vrot.lane.b32.xlu0 %v933, 8
        %v967 = vpop.permute.xlu0 %966
        %968 = vrot.lane.b32.xlu0 %v934, 8
        %v969 = vpop.permute.xlu0 %968
        %970 = vrot.lane.b32.xlu0 %v935, 8
        %v971 = vpop.permute.xlu0 %970
        %972 = vrot.lane.b32.xlu0 %v936, 8
        %v973 = vpop.permute.xlu0 %972
        %974 = vrot.lane.b32.xlu0 %v937, 8
        %v975 = vpop.permute.xlu0 %974
        %976 = vrot.lane.b32.xlu0 %v938, 8
        %v977 = vpop.permute.xlu0 %976
        %978 = vrot.lane.b32.xlu0 %v939, 8
        %v979 = vpop.permute.xlu0 %978
        %980 = vrot.lane.b32.xlu0 %v940, 8
        %v981 = vpop.permute.xlu0 %980
        %982 = vrot.lane.b32.xlu0 %v941, 8
        %v983 = vpop.permute.xlu0 %982
        %984 = vrot.lane.b32.xlu0 %v942, 8
        %v985 = vpop.permute.xlu0 %984
        %986 = vrot.lane.b32.xlu0 %v943, 8
        %v987 = vpop.permute.xlu0 %986
        %988 = vrot.lane.b32.xlu0 %v944, 8
        %v989 = vpop.permute.xlu0 %988
        %990 = vrot.lane.b32.xlu0 %v945, 8
        %v991 = vpop.permute.xlu0 %990
        %992 = vrot.lane.b32.xlu0 %v946, 8
        %v993 = vpop.permute.xlu0 %992
        %994 = vrot.lane.b32.xlu0 %v947, 8
        %v995 = vpop.permute.xlu0 %994
        %v1012 = vadd.f32 %v896, %v965
        %v1013 = vadd.f32 %v897, %v967
        %v1014 = vadd.f32 %v898, %v969
        %v1015 = vadd.f32 %v899, %v971
        %v1016 = vadd.f32 %v900, %v973
        %v1017 = vadd.f32 %v901, %v975
        %v1018 = vadd.f32 %v902, %v977
        %v1019 = vadd.f32 %v903, %v979
        %v1020 = vadd.f32 %v904, %v981
        %v1021 = vadd.f32 %v905, %v983
        %v1022 = vadd.f32 %v906, %v985
        %v1023 = vadd.f32 %v907, %v987
        %v1024 = vadd.f32 %v908, %v989
        %v1025 = vadd.f32 %v909, %v991
        %v1026 = vadd.f32 %v910, %v993
        %v1027 = vadd.f32 %v911, %v995
        %v1028 = vld [vmem:[#allocation2 + $0x2] sm:$0xff]
        %v1029 = vld [vmem:[#allocation2 + $0xa] sm:$0xff]
        %v1030 = vld [vmem:[#allocation2 + $0x1a] sm:$0xff]
        %v1031 = vld [vmem:[#allocation2 + $0x22] sm:$0xff]
        %v1032 = vld [vmem:[#allocation2 + $0x32] sm:$0xff]
        %v1033 = vld [vmem:[#allocation2 + $0x3a] sm:$0xff]
        %v1034 = vld [vmem:[#allocation2 + $0x4a] sm:$0xff]
        %v1035 = vld [vmem:[#allocation2 + $0x52] sm:$0xff]
        %v1036 = vld [vmem:[#allocation2 + $0x62] sm:$0xff]
        %v1037 = vld [vmem:[#allocation2 + $0x6a] sm:$0xff]
        %v1038 = vld [vmem:[#allocation2 + $0x7a] sm:$0xff]
        %v1039 = vld [vmem:[#allocation2 + $0x82] sm:$0xff]
        %v1040 = vld [vmem:[#allocation2 + $0x92] sm:$0xff]
        %v1041 = vld [vmem:[#allocation2 + $0x9a] sm:$0xff]
        %v1042 = vld [vmem:[#allocation2 + $0xaa] sm:$0xff]
        %v1043 = vld [vmem:[#allocation2 + $0xb2] sm:$0xff]
        %v1044 = vlaneseq
        %v1045 = vshrl.u32 %v1044, 7
        %v1046 = vsub.s32 2, %v1045
        %v1047 = vrot.slane %v769, %v1046
        %v1048 = vmul.f32 %v1028, %v1047
        %v1049 = vmul.f32 %v1029, %v1047
        %v1050 = vmul.f32 %v1030, %v1047
        %v1051 = vmul.f32 %v1031, %v1047
        %v1052 = vmul.f32 %v1032, %v1047
        %v1053 = vmul.f32 %v1033, %v1047
        %v1054 = vmul.f32 %v1034, %v1047
        %v1055 = vmul.f32 %v1035, %v1047
        %v1056 = vmul.f32 %v1036, %v1047
        %v1057 = vmul.f32 %v1037, %v1047
        %v1058 = vmul.f32 %v1038, %v1047
        %v1059 = vmul.f32 %v1039, %v1047
        %v1060 = vmul.f32 %v1040, %v1047
        %v1061 = vmul.f32 %v1041, %v1047
        %v1062 = vmul.f32 %v1042, %v1047
        %v1063 = vmul.f32 %v1043, %v1047
        %1080 = vrot.lane.b32.xlu0 %v1048, 8
        %v1081 = vpop.permute.xlu0 %1080
        %1082 = vrot.lane.b32.xlu0 %v1049, 8
        %v1083 = vpop.permute.xlu0 %1082
        %1084 = vrot.lane.b32.xlu0 %v1050, 8
        %v1085 = vpop.permute.xlu0 %1084
        %1086 = vrot.lane.b32.xlu0 %v1051, 8
        %v1087 = vpop.permute.xlu0 %1086
        %1088 = vrot.lane.b32.xlu0 %v1052, 8
        %v1089 = vpop.permute.xlu0 %1088
        %1090 = vrot.lane.b32.xlu0 %v1053, 8
        %v1091 = vpop.permute.xlu0 %1090
        %1092 = vrot.lane.b32.xlu0 %v1054, 8
        %v1093 = vpop.permute.xlu0 %1092
        %1094 = vrot.lane.b32.xlu0 %v1055, 8
        %v1095 = vpop.permute.xlu0 %1094
        %1096 = vrot.lane.b32.xlu0 %v1056, 8
        %v1097 = vpop.permute.xlu0 %1096
        %1098 = vrot.lane.b32.xlu0 %v1057, 8
        %v1099 = vpop.permute.xlu0 %1098
        %1100 = vrot.lane.b32.xlu0 %v1058, 8
        %v1101 = vpop.permute.xlu0 %1100
        %1102 = vrot.lane.b32.xlu0 %v1059, 8
        %v1103 = vpop.permute.xlu0 %1102
        %1104 = vrot.lane.b32.xlu0 %v1060, 8
        %v1105 = vpop.permute.xlu0 %1104
        %1106 = vrot.lane.b32.xlu0 %v1061, 8
        %v1107 = vpop.permute.xlu0 %1106
        %1108 = vrot.lane.b32.xlu0 %v1062, 8
        %v1109 = vpop.permute.xlu0 %1108
        %1110 = vrot.lane.b32.xlu0 %v1063, 8
        %v1111 = vpop.permute.xlu0 %1110
        %v1128 = vadd.f32 %v1012, %v1081
        %v1129 = vadd.f32 %v1013, %v1083
        %v1130 = vadd.f32 %v1014, %v1085
        %v1131 = vadd.f32 %v1015, %v1087
        %v1132 = vadd.f32 %v1016, %v1089
        %v1133 = vadd.f32 %v1017, %v1091
        %v1134 = vadd.f32 %v1018, %v1093
        %v1135 = vadd.f32 %v1019, %v1095
        %v1136 = vadd.f32 %v1020, %v1097
        %v1137 = vadd.f32 %v1021, %v1099
        %v1138 = vadd.f32 %v1022, %v1101
        %v1139 = vadd.f32 %v1023, %v1103
        %v1140 = vadd.f32 %v1024, %v1105
        %v1141 = vadd.f32 %v1025, %v1107
        %v1142 = vadd.f32 %v1026, %v1109
        %v1143 = vadd.f32 %v1027, %v1111
        %v1144 = vld [vmem:[%s567] sm:$0xff]
        %v1145 = vld [vmem:[%s567 + $0x8] sm:$0xff]
        %v1146 = vld [vmem:[%s567 + $0x18] sm:$0xff]
        %v1147 = vld [vmem:[%s567 + $0x20] sm:$0xff]
        %v1148 = vld [vmem:[%s567 + $0x30] sm:$0xff]
        %v1149 = vld [vmem:[%s567 + $0x38] sm:$0xff]
        %v1150 = vld [vmem:[%s567 + $0x48] sm:$0xff]
        %v1151 = vld [vmem:[%s567 + $0x50] sm:$0xff]
        %v1152 = vld [vmem:[%s567 + $0x60] sm:$0xff]
        %v1153 = vld [vmem:[%s567 + $0x68] sm:$0xff]
        %v1154 = vld [vmem:[%s567 + $0x78] sm:$0xff]
        %v1155 = vld [vmem:[%s567 + $0x80] sm:$0xff]
        %v1156 = vld [vmem:[%s567 + $0x90] sm:$0xff]
        %v1157 = vld [vmem:[%s567 + $0x98] sm:$0xff]
        %v1158 = vld [vmem:[%s567 + $0xa8] sm:$0xff]
        %v1159 = vld [vmem:[%s567 + $0xb0] sm:$0xff]
        %v1160 = vlaneseq
        %v1161 = vshrl.u32 %v1160, 7
        %v1162 = vsub.s32 3, %v1161
        %v1163 = vrot.slane %v769, %v1162
        %v1164 = vmul.f32 %v1144, %v1163
        %v1165 = vmul.f32 %v1145, %v1163
        %v1166 = vmul.f32 %v1146, %v1163
        %v1167 = vmul.f32 %v1147, %v1163
        %v1168 = vmul.f32 %v1148, %v1163
        %v1169 = vmul.f32 %v1149, %v1163
        %v1170 = vmul.f32 %v1150, %v1163
        %v1171 = vmul.f32 %v1151, %v1163
        %v1172 = vmul.f32 %v1152, %v1163
        %v1173 = vmul.f32 %v1153, %v1163
        %v1174 = vmul.f32 %v1154, %v1163
        %v1175 = vmul.f32 %v1155, %v1163
        %v1176 = vmul.f32 %v1156, %v1163
        %v1177 = vmul.f32 %v1157, %v1163
        %v1178 = vmul.f32 %v1158, %v1163
        %v1179 = vmul.f32 %v1159, %v1163
        %1196 = vrot.lane.b32.xlu0 %v1164, 8
        %v1197 = vpop.permute.xlu0 %1196
        %1198 = vrot.lane.b32.xlu0 %v1165, 8
        %v1199 = vpop.permute.xlu0 %1198
        %1200 = vrot.lane.b32.xlu0 %v1166, 8
        %v1201 = vpop.permute.xlu0 %1200
        %1202 = vrot.lane.b32.xlu0 %v1167, 8
        %v1203 = vpop.permute.xlu0 %1202
        %1204 = vrot.lane.b32.xlu0 %v1168, 8
        %v1205 = vpop.permute.xlu0 %1204
        %1206 = vrot.lane.b32.xlu0 %v1169, 8
        %v1207 = vpop.permute.xlu0 %1206
        %1208 = vrot.lane.b32.xlu0 %v1170, 8
        %v1209 = vpop.permute.xlu0 %1208
        %1210 = vrot.lane.b32.xlu0 %v1171, 8
        %v1211 = vpop.permute.xlu0 %1210
        %1212 = vrot.lane.b32.xlu0 %v1172, 8
        %v1213 = vpop.permute.xlu0 %1212
        %1214 = vrot.lane.b32.xlu0 %v1173, 8
        %v1215 = vpop.permute.xlu0 %1214
        %1216 = vrot.lane.b32.xlu0 %v1174, 8
        %v1217 = vpop.permute.xlu0 %1216
        %1218 = vrot.lane.b32.xlu0 %v1175, 8
        %v1219 = vpop.permute.xlu0 %1218
        %1220 = vrot.lane.b32.xlu0 %v1176, 8
        %v1221 = vpop.permute.xlu0 %1220
        %1222 = vrot.lane.b32.xlu0 %v1177, 8
        %v1223 = vpop.permute.xlu0 %1222
        %1224 = vrot.lane.b32.xlu0 %v1178, 8
        %v1225 = vpop.permute.xlu0 %1224
        %1226 = vrot.lane.b32.xlu0 %v1179, 8
        %v1227 = vpop.permute.xlu0 %1226
        %v1244 = vadd.f32 %v1128, %v1197
        %v1245 = vadd.f32 %v1129, %v1199
        %v1246 = vadd.f32 %v1130, %v1201
        %v1247 = vadd.f32 %v1131, %v1203
        %v1248 = vadd.f32 %v1132, %v1205
        %v1249 = vadd.f32 %v1133, %v1207
        %v1250 = vadd.f32 %v1134, %v1209
        %v1251 = vadd.f32 %v1135, %v1211
        %v1252 = vadd.f32 %v1136, %v1213
        %v1253 = vadd.f32 %v1137, %v1215
        %v1254 = vadd.f32 %v1138, %v1217
        %v1255 = vadd.f32 %v1139, %v1219
        %v1256 = vadd.f32 %v1140, %v1221
        %v1257 = vadd.f32 %v1141, %v1223
        %v1258 = vadd.f32 %v1142, %v1225
        %v1259 = vadd.f32 %v1143, %v1227
        %v1260 = vld [vmem:[%s567 + $0x1] sm:$0xff]
        %v1261 = vld [vmem:[%s567 + $0x9] sm:$0xff]
        %v1262 = vld [vmem:[%s567 + $0x19] sm:$0xff]
        %v1263 = vld [vmem:[%s567 + $0x21] sm:$0xff]
        %v1264 = vld [vmem:[%s567 + $0x31] sm:$0xff]
        %v1265 = vld [vmem:[%s567 + $0x39] sm:$0xff]
        %v1266 = vld [vmem:[%s567 + $0x49] sm:$0xff]
        %v1267 = vld [vmem:[%s567 + $0x51] sm:$0xff]
        %v1268 = vld [vmem:[%s567 + $0x61] sm:$0xff]
        %v1269 = vld [vmem:[%s567 + $0x69] sm:$0xff]
        %v1270 = vld [vmem:[%s567 + $0x79] sm:$0xff]
        %v1271 = vld [vmem:[%s567 + $0x81] sm:$0xff]
        %v1272 = vld [vmem:[%s567 + $0x91] sm:$0xff]
        %v1273 = vld [vmem:[%s567 + $0x99] sm:$0xff]
        %v1274 = vld [vmem:[%s567 + $0xa9] sm:$0xff]
        %v1275 = vld [vmem:[%s567 + $0xb1] sm:$0xff]
        %v1276 = vlaneseq
        %v1277 = vshrl.u32 %v1276, 7
        %v1278 = vsub.s32 4, %v1277
        %v1279 = vrot.slane %v769, %v1278
        %v1280 = vmul.f32 %v1260, %v1279
        %v1281 = vmul.f32 %v1261, %v1279
        %v1282 = vmul.f32 %v1262, %v1279
        %v1283 = vmul.f32 %v1263, %v1279
        %v1284 = vmul.f32 %v1264, %v1279
        %v1285 = vmul.f32 %v1265, %v1279
        %v1286 = vmul.f32 %v1266, %v1279
        %v1287 = vmul.f32 %v1267, %v1279
        %v1288 = vmul.f32 %v1268, %v1279
        %v1289 = vmul.f32 %v1269, %v1279
        %v1290 = vmul.f32 %v1270, %v1279
        %v1291 = vmul.f32 %v1271, %v1279
        %v1292 = vmul.f32 %v1272, %v1279
        %v1293 = vmul.f32 %v1273, %v1279
        %v1294 = vmul.f32 %v1274, %v1279
        %v1295 = vmul.f32 %v1275, %v1279
        %1312 = vrot.lane.b32.xlu0 %v1280, 8
        %v1313 = vpop.permute.xlu0 %1312
        %1314 = vrot.lane.b32.xlu0 %v1281, 8
        %v1315 = vpop.permute.xlu0 %1314
        %1316 = vrot.lane.b32.xlu0 %v1282, 8
        %v1317 = vpop.permute.xlu0 %1316
        %1318 = vrot.lane.b32.xlu0 %v1283, 8
        %v1319 = vpop.permute.xlu0 %1318
        %1320 = vrot.lane.b32.xlu0 %v1284, 8
        %v1321 = vpop.permute.xlu0 %1320
        %1322 = vrot.lane.b32.xlu0 %v1285, 8
        %v1323 = vpop.permute.xlu0 %1322
        %1324 = vrot.lane.b32.xlu0 %v1286, 8
        %v1325 = vpop.permute.xlu0 %1324
        %1326 = vrot.lane.b32.xlu0 %v1287, 8
        %v1327 = vpop.permute.xlu0 %1326
        %1328 = vrot.lane.b32.xlu0 %v1288, 8
        %v1329 = vpop.permute.xlu0 %1328
        %1330 = vrot.lane.b32.xlu0 %v1289, 8
        %v1331 = vpop.permute.xlu0 %1330
        %1332 = vrot.lane.b32.xlu0 %v1290, 8
        %v1333 = vpop.permute.xlu0 %1332
        %1334 = vrot.lane.b32.xlu0 %v1291, 8
        %v1335 = vpop.permute.xlu0 %1334
        %1336 = vrot.lane.b32.xlu0 %v1292, 8
        %v1337 = vpop.permute.xlu0 %1336
        %1338 = vrot.lane.b32.xlu0 %v1293, 8
        %v1339 = vpop.permute.xlu0 %1338
        %1340 = vrot.lane.b32.xlu0 %v1294, 8
        %v1341 = vpop.permute.xlu0 %1340
        %1342 = vrot.lane.b32.xlu0 %v1295, 8
        %v1343 = vpop.permute.xlu0 %1342
        %v1360 = vadd.f32 %v1244, %v1313
        %v1361 = vadd.f32 %v1245, %v1315
        %v1362 = vadd.f32 %v1246, %v1317
        %v1363 = vadd.f32 %v1247, %v1319
        %v1364 = vadd.f32 %v1248, %v1321
        %v1365 = vadd.f32 %v1249, %v1323
        %v1366 = vadd.f32 %v1250, %v1325
        %v1367 = vadd.f32 %v1251, %v1327
        %v1368 = vadd.f32 %v1252, %v1329
        %v1369 = vadd.f32 %v1253, %v1331
        %v1370 = vadd.f32 %v1254, %v1333
        %v1371 = vadd.f32 %v1255, %v1335
        %v1372 = vadd.f32 %v1256, %v1337
        %v1373 = vadd.f32 %v1257, %v1339
        %v1374 = vadd.f32 %v1258, %v1341
        %v1375 = vadd.f32 %v1259, %v1343
        %v1376 = vld [vmem:[%s567 + $0x2] sm:$0xff]
        %v1377 = vld [vmem:[%s567 + $0xa] sm:$0xff]
        %v1378 = vld [vmem:[%s567 + $0x1a] sm:$0xff]
        %v1379 = vld [vmem:[%s567 + $0x22] sm:$0xff]
        %v1380 = vld [vmem:[%s567 + $0x32] sm:$0xff]
        %v1381 = vld [vmem:[%s567 + $0x3a] sm:$0xff]
        %v1382 = vld [vmem:[%s567 + $0x4a] sm:$0xff]
        %v1383 = vld [vmem:[%s567 + $0x52] sm:$0xff]
        %v1384 = vld [vmem:[%s567 + $0x62] sm:$0xff]
        %v1385 = vld [vmem:[%s567 + $0x6a] sm:$0xff]
        %v1386 = vld [vmem:[%s567 + $0x7a] sm:$0xff]
        %v1387 = vld [vmem:[%s567 + $0x82] sm:$0xff]
        %v1388 = vld [vmem:[%s567 + $0x92] sm:$0xff]
        %v1389 = vld [vmem:[%s567 + $0x9a] sm:$0xff]
        %v1390 = vld [vmem:[%s567 + $0xaa] sm:$0xff]
        %v1391 = vld [vmem:[%s567 + $0xb2] sm:$0xff]
        %v1392 = vlaneseq
        %v1393 = vshrl.u32 %v1392, 7
        %v1394 = vsub.s32 5, %v1393
        %v1395 = vrot.slane %v769, %v1394
        %v1396 = vmul.f32 %v1376, %v1395
        %v1397 = vmul.f32 %v1377, %v1395
        %v1398 = vmul.f32 %v1378, %v1395
        %v1399 = vmul.f32 %v1379, %v1395
        %v1400 = vmul.f32 %v1380, %v1395
        %v1401 = vmul.f32 %v1381, %v1395
        %v1402 = vmul.f32 %v1382, %v1395
        %v1403 = vmul.f32 %v1383, %v1395
        %v1404 = vmul.f32 %v1384, %v1395
        %v1405 = vmul.f32 %v1385, %v1395
        %v1406 = vmul.f32 %v1386, %v1395
        %v1407 = vmul.f32 %v1387, %v1395
        %v1408 = vmul.f32 %v1388, %v1395
        %v1409 = vmul.f32 %v1389, %v1395
        %v1410 = vmul.f32 %v1390, %v1395
        %v1411 = vmul.f32 %v1391, %v1395
        %1428 = vrot.lane.b32.xlu0 %v1396, 8
        %v1429 = vpop.permute.xlu0 %1428
        %1430 = vrot.lane.b32.xlu0 %v1397, 8
        %v1431 = vpop.permute.xlu0 %1430
        %1432 = vrot.lane.b32.xlu0 %v1398, 8
        %v1433 = vpop.permute.xlu0 %1432
        %1434 = vrot.lane.b32.xlu0 %v1399, 8
        %v1435 = vpop.permute.xlu0 %1434
        %1436 = vrot.lane.b32.xlu0 %v1400, 8
        %v1437 = vpop.permute.xlu0 %1436
        %1438 = vrot.lane.b32.xlu0 %v1401, 8
        %v1439 = vpop.permute.xlu0 %1438
        %1440 = vrot.lane.b32.xlu0 %v1402, 8
        %v1441 = vpop.permute.xlu0 %1440
        %1442 = vrot.lane.b32.xlu0 %v1403, 8
        %v1443 = vpop.permute.xlu0 %1442
        %1444 = vrot.lane.b32.xlu0 %v1404, 8
        %v1445 = vpop.permute.xlu0 %1444
        %1446 = vrot.lane.b32.xlu0 %v1405, 8
        %v1447 = vpop.permute.xlu0 %1446
        %1448 = vrot.lane.b32.xlu0 %v1406, 8
        %v1449 = vpop.permute.xlu0 %1448
        %1450 = vrot.lane.b32.xlu0 %v1407, 8
        %v1451 = vpop.permute.xlu0 %1450
        %1452 = vrot.lane.b32.xlu0 %v1408, 8
        %v1453 = vpop.permute.xlu0 %1452
        %1454 = vrot.lane.b32.xlu0 %v1409, 8
        %v1455 = vpop.permute.xlu0 %1454
        %1456 = vrot.lane.b32.xlu0 %v1410, 8
        %v1457 = vpop.permute.xlu0 %1456
        %1458 = vrot.lane.b32.xlu0 %v1411, 8
        %v1459 = vpop.permute.xlu0 %1458
        %v1476 = vadd.f32 %v1360, %v1429
        %v1477 = vadd.f32 %v1361, %v1431
        %v1478 = vadd.f32 %v1362, %v1433
        %v1479 = vadd.f32 %v1363, %v1435
        %v1480 = vadd.f32 %v1364, %v1437
        %v1481 = vadd.f32 %v1365, %v1439
        %v1482 = vadd.f32 %v1366, %v1441
        %v1483 = vadd.f32 %v1367, %v1443
        %v1484 = vadd.f32 %v1368, %v1445
        %v1485 = vadd.f32 %v1369, %v1447
        %v1486 = vadd.f32 %v1370, %v1449
        %v1487 = vadd.f32 %v1371, %v1451
        %v1488 = vadd.f32 %v1372, %v1453
        %v1489 = vadd.f32 %v1373, %v1455
        %v1490 = vadd.f32 %v1374, %v1457
        %v1491 = vadd.f32 %v1375, %v1459
        %s1492 = scalar_lea.vmem [#allocation2], 48
        %v1493 = vld [vmem:[%s1492] sm:$0xff]
        %v1494 = vld [vmem:[%s1492 + $0x8] sm:$0xff]
        %v1495 = vld [vmem:[%s1492 + $0x18] sm:$0xff]
        %v1496 = vld [vmem:[%s1492 + $0x20] sm:$0xff]
        %v1497 = vld [vmem:[%s1492 + $0x30] sm:$0xff]
        %v1498 = vld [vmem:[%s1492 + $0x38] sm:$0xff]
        %v1499 = vld [vmem:[%s1492 + $0x48] sm:$0xff]
        %v1500 = vld [vmem:[%s1492 + $0x50] sm:$0xff]
        %v1501 = vld [vmem:[%s1492 + $0x60] sm:$0xff]
        %v1502 = vld [vmem:[%s1492 + $0x68] sm:$0xff]
        %v1503 = vld [vmem:[%s1492 + $0x78] sm:$0xff]
        %v1504 = vld [vmem:[%s1492 + $0x80] sm:$0xff]
        %v1505 = vld [vmem:[%s1492 + $0x90] sm:$0xff]
        %v1506 = vld [vmem:[%s1492 + $0x98] sm:$0xff]
        %v1507 = vld [vmem:[%s1492 + $0xa8] sm:$0xff]
        %v1508 = vld [vmem:[%s1492 + $0xb0] sm:$0xff]
        %v1509 = vlaneseq
        %v1510 = vshrl.u32 %v1509, 7
        %v1511 = vsub.s32 6, %v1510
        %v1512 = vrot.slane %v769, %v1511
        %v1513 = vmul.f32 %v1493, %v1512
        %v1514 = vmul.f32 %v1494, %v1512
        %v1515 = vmul.f32 %v1495, %v1512
        %v1516 = vmul.f32 %v1496, %v1512
        %v1517 = vmul.f32 %v1497, %v1512
        %v1518 = vmul.f32 %v1498, %v1512
        %v1519 = vmul.f32 %v1499, %v1512
        %v1520 = vmul.f32 %v1500, %v1512
        %v1521 = vmul.f32 %v1501, %v1512
        %v1522 = vmul.f32 %v1502, %v1512
        %v1523 = vmul.f32 %v1503, %v1512
        %v1524 = vmul.f32 %v1504, %v1512
        %v1525 = vmul.f32 %v1505, %v1512
        %v1526 = vmul.f32 %v1506, %v1512
        %v1527 = vmul.f32 %v1507, %v1512
        %v1528 = vmul.f32 %v1508, %v1512
        %1545 = vrot.lane.b32.xlu0 %v1513, 8
        %v1546 = vpop.permute.xlu0 %1545
        %1547 = vrot.lane.b32.xlu0 %v1514, 8
        %v1548 = vpop.permute.xlu0 %1547
        %1549 = vrot.lane.b32.xlu0 %v1515, 8
        %v1550 = vpop.permute.xlu0 %1549
        %1551 = vrot.lane.b32.xlu0 %v1516, 8
        %v1552 = vpop.permute.xlu0 %1551
        %1553 = vrot.lane.b32.xlu0 %v1517, 8
        %v1554 = vpop.permute.xlu0 %1553
        %1555 = vrot.lane.b32.xlu0 %v1518, 8
        %v1556 = vpop.permute.xlu0 %1555
        %1557 = vrot.lane.b32.xlu0 %v1519, 8
        %v1558 = vpop.permute.xlu0 %1557
        %1559 = vrot.lane.b32.xlu0 %v1520, 8
        %v1560 = vpop.permute.xlu0 %1559
        %1561 = vrot.lane.b32.xlu0 %v1521, 8
        %v1562 = vpop.permute.xlu0 %1561
        %1563 = vrot.lane.b32.xlu0 %v1522, 8
        %v1564 = vpop.permute.xlu0 %1563
        %1565 = vrot.lane.b32.xlu0 %v1523, 8
        %v1566 = vpop.permute.xlu0 %1565
        %1567 = vrot.lane.b32.xlu0 %v1524, 8
        %v1568 = vpop.permute.xlu0 %1567
        %1569 = vrot.lane.b32.xlu0 %v1525, 8
        %v1570 = vpop.permute.xlu0 %1569
        %1571 = vrot.lane.b32.xlu0 %v1526, 8
        %v1572 = vpop.permute.xlu0 %1571
        %1573 = vrot.lane.b32.xlu0 %v1527, 8
        %v1574 = vpop.permute.xlu0 %1573
        %1575 = vrot.lane.b32.xlu0 %v1528, 8
        %v1576 = vpop.permute.xlu0 %1575
        %v1593 = vadd.f32 %v1476, %v1546
        %v1594 = vadd.f32 %v1477, %v1548
        %v1595 = vadd.f32 %v1478, %v1550
        %v1596 = vadd.f32 %v1479, %v1552
        %v1597 = vadd.f32 %v1480, %v1554
        %v1598 = vadd.f32 %v1481, %v1556
        %v1599 = vadd.f32 %v1482, %v1558
        %v1600 = vadd.f32 %v1483, %v1560
        %v1601 = vadd.f32 %v1484, %v1562
        %v1602 = vadd.f32 %v1485, %v1564
        %v1603 = vadd.f32 %v1486, %v1566
        %v1604 = vadd.f32 %v1487, %v1568
        %v1605 = vadd.f32 %v1488, %v1570
        %v1606 = vadd.f32 %v1489, %v1572
        %v1607 = vadd.f32 %v1490, %v1574
        %v1608 = vadd.f32 %v1491, %v1576
        %v1609 = vld [vmem:[%s1492 + $0x1] sm:$0xff]
        %v1610 = vld [vmem:[%s1492 + $0x9] sm:$0xff]
        %v1611 = vld [vmem:[%s1492 + $0x19] sm:$0xff]
        %v1612 = vld [vmem:[%s1492 + $0x21] sm:$0xff]
        %v1613 = vld [vmem:[%s1492 + $0x31] sm:$0xff]
        %v1614 = vld [vmem:[%s1492 + $0x39] sm:$0xff]
        %v1615 = vld [vmem:[%s1492 + $0x49] sm:$0xff]
        %v1616 = vld [vmem:[%s1492 + $0x51] sm:$0xff]
        %v1617 = vld [vmem:[%s1492 + $0x61] sm:$0xff]
        %v1618 = vld [vmem:[%s1492 + $0x69] sm:$0xff]
        %v1619 = vld [vmem:[%s1492 + $0x79] sm:$0xff]
        %v1620 = vld [vmem:[%s1492 + $0x81] sm:$0xff]
        %v1621 = vld [vmem:[%s1492 + $0x91] sm:$0xff]
        %v1622 = vld [vmem:[%s1492 + $0x99] sm:$0xff]
        %v1623 = vld [vmem:[%s1492 + $0xa9] sm:$0xff]
        %v1624 = vld [vmem:[%s1492 + $0xb1] sm:$0xff]
        %v1625 = vlaneseq
        %v1626 = vshrl.u32 %v1625, 7
        %v1627 = vsub.s32 7, %v1626
        %v1628 = vrot.slane %v769, %v1627
        %v1629 = vmul.f32 %v1609, %v1628
        %v1630 = vmul.f32 %v1610, %v1628
        %v1631 = vmul.f32 %v1611, %v1628
        %v1632 = vmul.f32 %v1612, %v1628
        %v1633 = vmul.f32 %v1613, %v1628
        %v1634 = vmul.f32 %v1614, %v1628
        %v1635 = vmul.f32 %v1615, %v1628
        %v1636 = vmul.f32 %v1616, %v1628
        %v1637 = vmul.f32 %v1617, %v1628
        %v1638 = vmul.f32 %v1618, %v1628
        %v1639 = vmul.f32 %v1619, %v1628
        %v1640 = vmul.f32 %v1620, %v1628
        %v1641 = vmul.f32 %v1621, %v1628
        %v1642 = vmul.f32 %v1622, %v1628
        %v1643 = vmul.f32 %v1623, %v1628
        %v1644 = vmul.f32 %v1624, %v1628
        %1661 = vrot.lane.b32.xlu0 %v1629, 8
        %v1662 = vpop.permute.xlu0 %1661
        %1663 = vrot.lane.b32.xlu0 %v1630, 8
        %v1664 = vpop.permute.xlu0 %1663
        %1665 = vrot.lane.b32.xlu0 %v1631, 8
        %v1666 = vpop.permute.xlu0 %1665
        %1667 = vrot.lane.b32.xlu0 %v1632, 8
        %v1668 = vpop.permute.xlu0 %1667
        %1669 = vrot.lane.b32.xlu0 %v1633, 8
        %v1670 = vpop.permute.xlu0 %1669
        %1671 = vrot.lane.b32.xlu0 %v1634, 8
        %v1672 = vpop.permute.xlu0 %1671
        %1673 = vrot.lane.b32.xlu0 %v1635, 8
        %v1674 = vpop.permute.xlu0 %1673
        %1675 = vrot.lane.b32.xlu0 %v1636, 8
        %v1676 = vpop.permute.xlu0 %1675
        %1677 = vrot.lane.b32.xlu0 %v1637, 8
        %v1678 = vpop.permute.xlu0 %1677
        %1679 = vrot.lane.b32.xlu0 %v1638, 8
        %v1680 = vpop.permute.xlu0 %1679
        %1681 = vrot.lane.b32.xlu0 %v1639, 8
        %v1682 = vpop.permute.xlu0 %1681
        %1683 = vrot.lane.b32.xlu0 %v1640, 8
        %v1684 = vpop.permute.xlu0 %1683
        %1685 = vrot.lane.b32.xlu0 %v1641, 8
        %v1686 = vpop.permute.xlu0 %1685
        %1687 = vrot.lane.b32.xlu0 %v1642, 8
        %v1688 = vpop.permute.xlu0 %1687
        %1689 = vrot.lane.b32.xlu0 %v1643, 8
        %v1690 = vpop.permute.xlu0 %1689
        %1691 = vrot.lane.b32.xlu0 %v1644, 8
        %v1692 = vpop.permute.xlu0 %1691
        %v1709 = vadd.f32 %v1593, %v1662
        %v1710 = vadd.f32 %v1594, %v1664
        %v1711 = vadd.f32 %v1595, %v1666
        %v1712 = vadd.f32 %v1596, %v1668
        %v1713 = vadd.f32 %v1597, %v1670
        %v1714 = vadd.f32 %v1598, %v1672
        %v1715 = vadd.f32 %v1599, %v1674
        %v1716 = vadd.f32 %v1600, %v1676
        %v1717 = vadd.f32 %v1601, %v1678
        %v1718 = vadd.f32 %v1602, %v1680
        %v1719 = vadd.f32 %v1603, %v1682
        %v1720 = vadd.f32 %v1604, %v1684
        %v1721 = vadd.f32 %v1605, %v1686
        %v1722 = vadd.f32 %v1606, %v1688
        %v1723 = vadd.f32 %v1607, %v1690
        %v1724 = vadd.f32 %v1608, %v1692
        %v1725 = vld [vmem:[%s1492 + $0x2] sm:$0xff]
        %v1726 = vld [vmem:[%s1492 + $0xa] sm:$0xff]
        %v1727 = vld [vmem:[%s1492 + $0x1a] sm:$0xff]
        %v1728 = vld [vmem:[%s1492 + $0x22] sm:$0xff]
        %v1729 = vld [vmem:[%s1492 + $0x32] sm:$0xff]
        %v1730 = vld [vmem:[%s1492 + $0x3a] sm:$0xff]
        %v1731 = vld [vmem:[%s1492 + $0x4a] sm:$0xff]
        %v1732 = vld [vmem:[%s1492 + $0x52] sm:$0xff]
        %v1733 = vld [vmem:[%s1492 + $0x62] sm:$0xff]
        %v1734 = vld [vmem:[%s1492 + $0x6a] sm:$0xff]
        %v1735 = vld [vmem:[%s1492 + $0x7a] sm:$0xff]
        %v1736 = vld [vmem:[%s1492 + $0x82] sm:$0xff]
        %v1737 = vld [vmem:[%s1492 + $0x92] sm:$0xff]
        %v1738 = vld [vmem:[%s1492 + $0x9a] sm:$0xff]
        %v1739 = vld [vmem:[%s1492 + $0xaa] sm:$0xff]
        %v1740 = vld [vmem:[%s1492 + $0xb2] sm:$0xff]
        %v1741 = vlaneseq
        %v1742 = vshrl.u32 %v1741, 7
        %v1743 = vsub.s32 0, %v1742
        %v1744 = vrot.slane %v770, %v1743
        %v1745 = vmul.f32 %v1725, %v1744
        %v1746 = vmul.f32 %v1726, %v1744
        %v1747 = vmul.f32 %v1727, %v1744
        %v1748 = vmul.f32 %v1728, %v1744
        %v1749 = vmul.f32 %v1729, %v1744
        %v1750 = vmul.f32 %v1730, %v1744
        %v1751 = vmul.f32 %v1731, %v1744
        %v1752 = vmul.f32 %v1732, %v1744
        %v1753 = vmul.f32 %v1733, %v1744
        %v1754 = vmul.f32 %v1734, %v1744
        %v1755 = vmul.f32 %v1735, %v1744
        %v1756 = vmul.f32 %v1736, %v1744
        %v1757 = vmul.f32 %v1737, %v1744
        %v1758 = vmul.f32 %v1738, %v1744
        %v1759 = vmul.f32 %v1739, %v1744
        %v1760 = vmul.f32 %v1740, %v1744
        %1777 = vrot.lane.b32.xlu0 %v1745, 8
        %v1778 = vpop.permute.xlu0 %1777
        %1779 = vrot.lane.b32.xlu0 %v1746, 8
        %v1780 = vpop.permute.xlu0 %1779
        %1781 = vrot.lane.b32.xlu0 %v1747, 8
        %v1782 = vpop.permute.xlu0 %1781
        %1783 = vrot.lane.b32.xlu0 %v1748, 8
        %v1784 = vpop.permute.xlu0 %1783
        %1785 = vrot.lane.b32.xlu0 %v1749, 8
        %v1786 = vpop.permute.xlu0 %1785
        %1787 = vrot.lane.b32.xlu0 %v1750, 8
        %v1788 = vpop.permute.xlu0 %1787
        %1789 = vrot.lane.b32.xlu0 %v1751, 8
        %v1790 = vpop.permute.xlu0 %1789
        %1791 = vrot.lane.b32.xlu0 %v1752, 8
        %v1792 = vpop.permute.xlu0 %1791
        %1793 = vrot.lane.b32.xlu0 %v1753, 8
        %v1794 = vpop.permute.xlu0 %1793
        %1795 = vrot.lane.b32.xlu0 %v1754, 8
        %v1796 = vpop.permute.xlu0 %1795
        %1797 = vrot.lane.b32.xlu0 %v1755, 8
        %v1798 = vpop.permute.xlu0 %1797
        %1799 = vrot.lane.b32.xlu0 %v1756, 8
        %v1800 = vpop.permute.xlu0 %1799
        %1801 = vrot.lane.b32.xlu0 %v1757, 8
        %v1802 = vpop.permute.xlu0 %1801
        %1803 = vrot.lane.b32.xlu0 %v1758, 8
        %v1804 = vpop.permute.xlu0 %1803
        %1805 = vrot.lane.b32.xlu0 %v1759, 8
        %v1806 = vpop.permute.xlu0 %1805
        %1807 = vrot.lane.b32.xlu0 %v1760, 8
        %v1808 = vpop.permute.xlu0 %1807
        %v1825 = vadd.f32 %v1709, %v1778
        %v1826 = vadd.f32 %v1710, %v1780
        %v1827 = vadd.f32 %v1711, %v1782
        %v1828 = vadd.f32 %v1712, %v1784
        %v1829 = vadd.f32 %v1713, %v1786
        %v1830 = vadd.f32 %v1714, %v1788
        %v1831 = vadd.f32 %v1715, %v1790
        %v1832 = vadd.f32 %v1716, %v1792
        %v1833 = vadd.f32 %v1717, %v1794
        %v1834 = vadd.f32 %v1718, %v1796
        %v1835 = vadd.f32 %v1719, %v1798
        %v1836 = vadd.f32 %v1720, %v1800
        %v1837 = vadd.f32 %v1721, %v1802
        %v1838 = vadd.f32 %v1722, %v1804
        %v1839 = vadd.f32 %v1723, %v1806
        %v1840 = vadd.f32 %v1724, %v1808
        %1857 = vrot.lane.b32.xlu0 %v1825, 120
        %v1858 = vpop.permute.xlu0 %1857
        %1859 = vrot.lane.b32.xlu0 %v1826, 120
        %v1860 = vpop.permute.xlu0 %1859
        %1861 = vrot.lane.b32.xlu0 %v1827, 120
        %v1862 = vpop.permute.xlu0 %1861
        %1863 = vrot.lane.b32.xlu0 %v1828, 120
        %v1864 = vpop.permute.xlu0 %1863
        %1865 = vrot.lane.b32.xlu0 %v1829, 120
        %v1866 = vpop.permute.xlu0 %1865
        %1867 = vrot.lane.b32.xlu0 %v1830, 120
        %v1868 = vpop.permute.xlu0 %1867
        %1869 = vrot.lane.b32.xlu0 %v1831, 120
        %v1870 = vpop.permute.xlu0 %1869
        %1871 = vrot.lane.b32.xlu0 %v1832, 120
        %v1872 = vpop.permute.xlu0 %1871
        %1873 = vrot.lane.b32.xlu0 %v1833, 120
        %v1874 = vpop.permute.xlu0 %1873
        %1875 = vrot.lane.b32.xlu0 %v1834, 120
        %v1876 = vpop.permute.xlu0 %1875
        %1877 = vrot.lane.b32.xlu0 %v1835, 120
        %v1878 = vpop.permute.xlu0 %1877
        %1879 = vrot.lane.b32.xlu0 %v1836, 120
        %v1880 = vpop.permute.xlu0 %1879
        %1881 = vrot.lane.b32.xlu0 %v1837, 120
        %v1882 = vpop.permute.xlu0 %1881
        %1883 = vrot.lane.b32.xlu0 %v1838, 120
        %v1884 = vpop.permute.xlu0 %1883
        %1885 = vrot.lane.b32.xlu0 %v1839, 120
        %v1886 = vpop.permute.xlu0 %1885
        %1887 = vrot.lane.b32.xlu0 %v1840, 120
        %v1888 = vpop.permute.xlu0 %1887
        %1905 = vst.msk [vmem:[%s308] sm:$0xff] %vm313, %v1858
        %1906 = vst.msk [vmem:[%s308 + $0x8] sm:$0xff] %vm313, %v1860
        %1907 = vst.msk [vmem:[%s308 + $0x10] sm:$0xff] %vm313, %v1862
        %1908 = vst.msk [vmem:[%s308 + $0x18] sm:$0xff] %vm313, %v1864
        %1909 = vst.msk [vmem:[%s308 + $0x20] sm:$0xff] %vm313, %v1866
        %1910 = vst.msk [vmem:[%s308 + $0x28] sm:$0xff] %vm313, %v1868
        %1911 = vst.msk [vmem:[%s308 + $0x30] sm:$0xff] %vm313, %v1870
        %1912 = vst.msk [vmem:[%s308 + $0x38] sm:$0xff] %vm313, %v1872
        %1913 = vst.msk [vmem:[%s308 + $0x40] sm:$0xff] %vm313, %v1874
        %1914 = vst.msk [vmem:[%s308 + $0x48] sm:$0xff] %vm313, %v1876
        %1915 = vst.msk [vmem:[%s308 + $0x50] sm:$0xff] %vm313, %v1878
        %1916 = vst.msk [vmem:[%s308 + $0x58] sm:$0xff] %vm313, %v1880
        %1917 = vst.msk [vmem:[%s308 + $0x60] sm:$0xff] %vm313, %v1882
        %1918 = vst.msk [vmem:[%s308 + $0x68] sm:$0xff] %vm313, %v1884
        %1919 = vst.msk [vmem:[%s308 + $0x70] sm:$0xff] %vm313, %v1886
        %1920 = vst.msk [vmem:[%s308 + $0x78] sm:$0xff] %vm313, %v1888
        %s1921 = sand.u32 %s156, 1
        %s1922 = scalar_lea.sflag [#allocation5], %s1921
        %s1923 = sand.u32 %s156, 1
        %s1924 = smul.addr %s1923, 128
        %s1925 = scalar_lea.vmem [#allocation12], %s1924
        // Predicated region
        $region69: #{tpu_custom_call.1} parent=39 // pred_check
          %p1926 = pneg %p166
        $region70: #{tpu_custom_call.1} parent=39 // pred_check_branch
          %1928 = sbr.rel (%p1926) target = $region72
        $region71: #{tpu_custom_call.1} parent=39 // pred_region
          %s1929 = smul.u32 8, %s29
          %s1931 = ssub.s32 2048, 2048
          %1932 = vsyncadd %s1922, %s1931
          %s1933 = smul.addr %s1929, 2
          %s1934 = smul.addr %s28, 32
          %s1935 = sadd.s32 %s1933, %s1934
          %s1936 = smul.addr %s1935, 128
          %s1937 = scalar_lea.hbm %s5, %s1936
          %s1938 = sshll.u32 %s1925, 4
          %s1939 = int_to_ptr.vmem [resolvable:$true] %s1938
          %1944 = dma.vmem_to_hbm [thread:$0]  %s1939, 2048, %s1937, %s1922, 128, 128, 8
        $region72: #{tpu_custom_call.1} parent=39 // pred_fallthru
          _
      $region40: #{tpu_custom_call.1} parent=5 // pred_fallthru
        _
      %p1945 = scmp.le.s32.totalorder 2, %s19
      // Predicated region
      $region73: #{tpu_custom_call.1} parent=5 // pred_check
        %p1946 = pneg %p1945
      $region74: #{tpu_custom_call.1} parent=5 // pred_check_branch
        %1948 = sbr.rel (%p1946) target = $region76
      $region75: #{tpu_custom_call.1} parent=5 // pred_region
        %s1949 = ssub.s32 %s19, 2
        // Predicated region
        $region77: #{tpu_custom_call.1} parent=75 // pred_check
          %p1950 = pneg %p172
        $region78: #{tpu_custom_call.1} parent=75 // pred_check_branch
          %1952 = sbr.rel (%p1950) target = $region80
        $region79: #{tpu_custom_call.1} parent=75 // pred_region
          %s1953 = sand.u32 %s157, 1
          %s1954 = scalar_lea.sflag [#allocation5], %s1953
          %s1955 = sand.u32 %s157, 1
          %s1956 = smul.addr %s1955, 128
          %s1957 = scalar_lea.vmem [#allocation12], %s1956
          %1958 = dma.done %s1954, 2048
        $region80: #{tpu_custom_call.1} parent=75 // pred_fallthru
          _
      $region76: #{tpu_custom_call.1} parent=5 // pred_fallthru
        _
    $region6: #{tpu_custom_call.1} parent=1 // loop_footer
      %s23 = sadd.s32 1, %s19
    $region7: #{tpu_custom_call.1} parent=1 // loop_footer_branch
      %18 = sbr.rel target = $region3
    $region8: #{tpu_custom_call.1} parent=1 // loop_exit
      _
    %1959 = vsyncpa [#allocation4], 1
    %s1960 = scalar_lea.sflag [#allocation4], 1
    %1961 = vsyncpa %s1960, 1
    %1962 = vsyncpa [#allocation7], 1
    %1963 = vsyncpa [#allocation10], 1
    %1964 = vsyncpa [#allocation5], 1
    %s1965 = scalar_lea.sflag [#allocation5], 1
    %1966 = vsyncpa %s1965, 1

</llo_original>
